<compile_context>
chip_gen: v6e
topology: v6e:2x2x1
jax: 0.10.0
libtpu: 0.0.40
codegen_flags: <defaults>
</compile_context>

<pallas_src>
import functools

import jax
import jax.numpy as jnp
from jax import lax
from jax.experimental import pallas as pl
from jax.experimental.pallas import tpu as pltpu


def _round_up(x, m):
    return (x + m - 1) // m * m


# ----------------------------------------------------------------------------
# Row-tiled linear projection kernel (used for proj_q / proj_k / proj_v)
# ----------------------------------------------------------------------------
def _linear_kernel(x_ref, w_ref, b_ref, o_ref):
    # x: (TR, Cin) f32, w: (Cin, Cout) bf16 (resident), b: (1, Cout) f32
    x = x_ref[...].astype(jnp.bfloat16)
    o_ref[...] = (
        jnp.dot(x, w_ref[...], preferred_element_type=jnp.float32) + b_ref[...]
    )


def pallas_linear(x2d, w_bf16, b, *, tr=512):
    """y = x @ W + b, tiled over rows with W/b resident and double-buffered rows."""
    R, Cin = x2d.shape
    Cout = w_bf16.shape[1]
    TR = min(tr, _round_up(R, 8))
    Rp = _round_up(R, TR)
    if Rp != R:
        x2d = jnp.pad(x2d, ((0, Rp - R), (0, 0)))
    out = pl.pallas_call(
        _linear_kernel,
        out_shape=jax.ShapeDtypeStruct((Rp, Cout), jnp.float32),
        grid=(Rp // TR,),
        in_specs=[
            pl.BlockSpec((TR, Cin), lambda r: (r, 0)),
            pl.BlockSpec((Cin, Cout), lambda r: (0, 0)),  # weights resident
            pl.BlockSpec((1, Cout), lambda r: (0, 0)),
        ],
        out_specs=pl.BlockSpec((TR, Cout), lambda r: (r, 0)),
        compiler_params=pltpu.CompilerParams(
            dimension_semantics=("parallel",),
            vmem_limit_bytes=48 * 1024 * 1024,
        ),
    )(x2d, w_bf16, b.reshape(1, Cout))
    return out[:R] if Rp != R else out


# ----------------------------------------------------------------------------
# Fused RPE attention kernel: in-kernel g projection + all heads per step
# ----------------------------------------------------------------------------
def _rpe_attn_kernel(q_ref, k_ref, v_ref, g_ref, wg_ref, bg_ref,
                     o_ref, attn_ref, *, num_heads):
    TQ, C = q_ref.shape          # query tile (pre-scaled by 1/sqrt(Ch))
    M = k_ref.shape[0]
    Ch = C // num_heads

    q = q_ref[...]                           # (TQ, C) f32, already scaled
    qb = q.astype(jnp.bfloat16)
    kb = k_ref[...].astype(jnp.bfloat16)     # (M, C)
    vb = v_ref[...].astype(jnp.bfloat16)     # (M, C)

    # Fused RPE projection on the streamed tile: g_proj = embed_g @ Wg + bg.
    g2 = g_ref[...].reshape(TQ * M, C).astype(jnp.bfloat16)
    gp = jnp.dot(g2, wg_ref[...], preferred_element_type=jnp.float32) + bg_ref[...]
    gp = gp.reshape(TQ, M, C)                # (TQ, M, C) f32

    # Full lane-width multiply for the p-scores (VPU); heads reduced per segment.
    prod = gp * q[:, None, :]                # (TQ, M, C) f32

    for h in range(num_heads):
        lo = h * Ch
        hi = lo + Ch
        # p-scores: sum over this head's channel segment (XLU lane reduce)
        s_p = jnp.sum(prod[:, :, lo:hi], axis=-1)                     # (TQ, M)
        # e-scores: q_h @ k_h^T on the MXU (bf16 operands, f32 accumulate)
        s_e = lax.dot_general(qb[:, lo:hi], kb[:, lo:hi],
                              (((1,), (1,)), ((), ())),
                              preferred_element_type=jnp.float32)     # (TQ, M)
        s = s_e + s_p                                                 # scale folded into q
        s = s - jnp.max(s, axis=-1, keepdims=True)
        p = jnp.exp(s)
        p = p * pl.reciprocal(jnp.sum(p, axis=-1, keepdims=True), approx=True)
        # attention output for this head -> lane-dense (TQ, C) output block
        o_ref[:, lo:hi] = jnp.dot(p.astype(jnp.bfloat16), vb[:, lo:hi],
                                  preferred_element_type=jnp.float32)
        attn_ref[h] = p


def rpe_multihead_attention(params, query, key, value, embed_g, *,
                            num_heads, tq=None):
    """RPEMultiheadAttention.forward -> (hidden_states (N,B,C), scores (B,H,N,M))."""
    N, B, C = query.shape
    M = key.shape[0]
    Ch = C // num_heads
    scale = 1.0 / (Ch ** 0.5)

    # Fold the 1/sqrt(Ch) scale into the q projection; pre-cast weights to bf16.
    wq = (params["wq"] * scale).astype(jnp.bfloat16)
    bq = params["bq"] * scale
    wk = params["wk"].astype(jnp.bfloat16)
    wv = params["wv"].astype(jnp.bfloat16)
    wg = params["wg"].astype(jnp.bfloat16)

    # Batch-major layouts for lane-dense attention blocks (small transposes).
    q_bnc = query.transpose(1, 0, 2)     # (B, N, C)
    k_bmc = key.transpose(1, 0, 2)       # (B, M, C)
    v_bmc = value.transpose(1, 0, 2)     # (B, M, C)

    q_proj = pallas_linear(q_bnc.reshape(B * N, C), wq, bq).reshape(B, N, C)
    k_proj = pallas_linear(k_bmc.reshape(B * M, C), wk, params["bk"]).reshape(B, M, C)
    v_proj = pallas_linear(v_bmc.reshape(B * M, C), wv, params["bv"]).reshape(B, M, C)

    # Choose the query tile so the (tq, M, C) g tile stays small enough for
    # double-buffering within the v7x VMEM budget as well.
    if tq is None:
        budget = 2 * 1024 * 1024                       # bytes per g-tile buffer
        tq = max(8, min(128, (budget // (M * C * 4)) // 8 * 8))
    tq = min(tq, _round_up(N, 8))
    Np = _round_up(N, tq)
    if Np != N:
        q_proj = jnp.pad(q_proj, ((0, 0), (0, Np - N), (0, 0)))
        embed_g = jnp.pad(embed_g, ((0, 0), (0, Np - N), (0, 0), (0, 0)))

    kern = functools.partial(_rpe_attn_kernel, num_heads=num_heads)
    hidden, attn = pl.pallas_call(
        kern,
        out_shape=(
            jax.ShapeDtypeStruct((B, Np, C), jnp.float32),
            jax.ShapeDtypeStruct((B, num_heads, Np, M), jnp.float32),
        ),
        grid=(B, Np // tq),
        in_specs=[
            pl.BlockSpec((None, tq, C), lambda b, i: (b, i, 0)),       # q tile
            pl.BlockSpec((None, M, C), lambda b, i: (b, 0, 0)),        # k (per batch)
            pl.BlockSpec((None, M, C), lambda b, i: (b, 0, 0)),        # v (per batch)
            pl.BlockSpec((None, tq, M, C), lambda b, i: (b, i, 0, 0)), # embed_g tile
            pl.BlockSpec((C, C), lambda b, i: (0, 0)),                 # Wg resident
            pl.BlockSpec((1, C), lambda b, i: (0, 0)),                 # bg resident
        ],
        out_specs=(
            pl.BlockSpec((None, tq, C), lambda b, i: (b, i, 0)),
            pl.BlockSpec((None, num_heads, tq, M), lambda b, i: (b, 0, i, 0)),
        ),
        compiler_params=pltpu.CompilerParams(
            dimension_semantics=("parallel", "parallel"),
            vmem_limit_bytes=48 * 1024 * 1024,
        ),
    )(q_proj, k_proj, v_proj, embed_g, wg, params["bg"].reshape(1, C))

    hidden = hidden[:, :N, :].transpose(1, 0, 2)       # (N, B, C)
    attn = attn[:, :, :N, :]                           # (B, H, N, M)
    return hidden, attn


# ----------------------------------------------------------------------------
# Pure-JAX f32 reference (mirrors the PyTorch forward exactly)
# ----------------------------------------------------------------------------
def _ref_rpe_mha(params, query, key, value, embed_g, num_heads):
    N, B, C = query.shape
    M = key.shape[0]
    Ch = C // num_heads

    def lin(x, w, b):
        return x @ w + b

    q = lin(query, params["wq"], params["bq"]).reshape(N, B, num_heads, Ch).transpose(1, 2, 0, 3)
    k = lin(key, params["wk"], params["bk"]).reshape(M, B, num_heads, Ch).transpose(1, 2, 0, 3)
    v = lin(value, params["wv"], params["bv"]).reshape(M, B, num_heads, Ch).transpose(1, 2, 0, 3)
    g = lin(embed_g, params["wg"], params["bg"]).reshape(B, N, M, num_heads, Ch).transpose(0, 3, 1, 2, 4)
    s_p = jnp.einsum("bhnc,bhnmc->bhnm", q, g)
    s_e = jnp.einsum("bhnc,bhmc->bhnm", q, k)
    scores = jax.nn.softmax((s_e + s_p) / Ch ** 0.5, axis=-1)
    hidden = jnp.einsum("bhnm,bhmc->bhnc", scores, v)
    hidden = hidden.transpose(2, 0, 1, 3).reshape(N, B, C)
    return hidden, scores


# ----------------------------------------------------------------------------
if __name__ == "__main__":
    d_model, num_heads = 64, 4
    B, N, M = 2, 20, 24          # N=20 exercises query-tile padding (tq=8 -> Np=24)

    key0 = jax.random.PRNGKey(0)
    ks = jax.random.split(key0, 12)

    def W(k, i, o):
        return jax.random.normal(k, (i, o), jnp.float32) * 0.05

    def Bv(k, o):
        return jax.random.normal(k, (o,), jnp.float32) * 0.05

    params = {
        "wq": W(ks[0], d_model, d_model), "bq": Bv(ks[1], d_model),
        "wk": W(ks[2], d_model, d_model), "bk": Bv(ks[3], d_model),
        "wv": W(ks[4], d_model, d_model), "bv": Bv(ks[5], d_model),
        "wg": W(ks[6], d_model, d_model), "bg": Bv(ks[7], d_model),
    }
    query = jax.random.normal(ks[8], (N, B, d_model), jnp.float32)
    key_in = jax.random.normal(ks[9], (M, B, d_model), jnp.float32)
    value = jax.random.normal(ks[10], (M, B, d_model), jnp.float32)
    embed_g = jax.random.normal(ks[11], (B, N, M, d_model), jnp.float32)

    fwd = jax.jit(functools.partial(rpe_multihead_attention,
                                    num_heads=num_heads, tq=8))
    hidden, attn = fwd(params, query, key_in, value, embed_g)
    jax.block_until_ready((hidden, attn))

    h_ref, a_ref = _ref_rpe_mha(params, query, key_in, value, embed_g, num_heads)
    assert hidden.shape == (N, B, d_model) and attn.shape == (B, num_heads, N, M)
    err_h = float(jnp.max(jnp.abs(hidden - h_ref)))
    err_a = float(jnp.max(jnp.abs(attn - a_ref)))
    # bf16 MXU operands + approx reciprocal -> small drift vs f32 reference
    assert err_h < 2e-2, ("hidden max abs err", err_h)
    assert err_a < 2e-2, ("scores max abs err", err_a)

    print("KERNEL_OK")
</pallas_src>

<mosaic_0001>
module attributes {stable_mosaic.version = 11 : i64} {
  func.func @_linear_kernel(%arg0: i32, %arg1: memref<40x64xf32, #tpu.memory_space<vmem>>, %arg2: memref<64x64xbf16, #tpu.memory_space<vmem>>, %arg3: memref<1x64xf32, #tpu.memory_space<vmem>>, %arg4: memref<40x64xf32, #tpu.memory_space<vmem>>) attributes {dimension_semantics = [#tpu.dimension_semantics<parallel>], iteration_bounds = array<i64: 1>, scalar_prefetch = 0 : i64, scratch_operands = 0 : i64, tpu.core_type = #tpu.core_type<tc>, window_params = [{transform_indices = @transform_0, window_bounds = array<i64: 40, 64>}, {pipeline_mode = #tpu.pipeline_mode<synchronous>, transform_indices = @transform_1, window_bounds = array<i64: 64, 64>}, {pipeline_mode = #tpu.pipeline_mode<synchronous>, transform_indices = @transform_2, window_bounds = array<i64: 1, 64>}, {transform_indices = @transform_3, window_bounds = array<i64: 40, 64>}]} {
    %c0 = arith.constant 0 : index
    %c0_0 = arith.constant 0 : index
    %0 = vector.load %arg1[%c0, %c0_0] : memref<40x64xf32, #tpu.memory_space<vmem>>, vector<40x64xf32>
    %1 = arith.truncf %0 : vector<40x64xf32> to vector<40x64xbf16>
    %c0_1 = arith.constant 0 : index
    %c0_2 = arith.constant 0 : index
    %2 = vector.load %arg2[%c0_1, %c0_2] : memref<64x64xbf16, #tpu.memory_space<vmem>>, vector<64x64xbf16>
    %cst = arith.constant dense<0.000000e+00> : vector<40x64xf32>
    %3 = tpu.matmul %1, %2, %cst {dimension_numbers = #tpu.dot_dimension_numbers<[1], [0], [0], [1], [0, 0, 1, 1], [], []>} : vector<40x64xbf16>, vector<64x64xbf16>, vector<40x64xf32> -> vector<40x64xf32>
    %c0_3 = arith.constant 0 : index
    %c0_4 = arith.constant 0 : index
    %4 = vector.load %arg3[%c0_3, %c0_4] : memref<1x64xf32, #tpu.memory_space<vmem>>, vector<1x64xf32>
    %5 = vector.broadcast %4 : vector<1x64xf32> to vector<40x64xf32>
    %6 = arith.addf %3, %5 : vector<40x64xf32>
    %c0_5 = arith.constant 0 : index
    %c0_6 = arith.constant 0 : index
    %7 = vector.load %arg4[%c0_5, %c0_6] : memref<40x64xf32, #tpu.memory_space<vmem>>, vector<40x64xf32>
    tpu.vector_store %arg4[%c0_5, %c0_6], %6 {strides = array<i32>} : memref<40x64xf32, #tpu.memory_space<vmem>>, vector<40x64xf32>,
    return
  }
  func.func @transform_0(%arg0: i32) -> (i32, i32) {
    %c0_i32 = arith.constant 0 : i32
    %c0_i32_0 = arith.constant 0 : i32
    return %arg0, %c0_i32 : i32, i32
  }
  func.func @transform_1(%arg0: i32) -> (i32, i32) {
    %c0_i32 = arith.constant 0 : i32
    %c0_i32_0 = arith.constant 0 : i32
    %c0_i32_1 = arith.constant 0 : i32
    return %c0_i32, %c0_i32_0 : i32, i32
  }
  func.func @transform_2(%arg0: i32) -> (i32, i32) {
    %c0_i32 = arith.constant 0 : i32
    %c0_i32_0 = arith.constant 0 : i32
    %c0_i32_1 = arith.constant 0 : i32
    return %c0_i32, %c0_i32_0 : i32, i32
  }
  func.func @transform_3(%arg0: i32) -> (i32, i32) {
    %c0_i32 = arith.constant 0 : i32
    %c0_i32_0 = arith.constant 0 : i32
    return %arg0, %c0_i32 : i32, i32
  }
}

module attributes {stable_mosaic.version = 11 : i64} {
  func.func @_linear_kernel(%arg0: i32, %arg1: memref<48x64xf32, #tpu.memory_space<vmem>>, %arg2: memref<64x64xbf16, #tpu.memory_space<vmem>>, %arg3: memref<1x64xf32, #tpu.memory_space<vmem>>, %arg4: memref<48x64xf32, #tpu.memory_space<vmem>>) attributes {dimension_semantics = [#tpu.dimension_semantics<parallel>], iteration_bounds = array<i64: 1>, scalar_prefetch = 0 : i64, scratch_operands = 0 : i64, tpu.core_type = #tpu.core_type<tc>, window_params = [{transform_indices = @transform_0, window_bounds = array<i64: 48, 64>}, {pipeline_mode = #tpu.pipeline_mode<synchronous>, transform_indices = @transform_1, window_bounds = array<i64: 64, 64>}, {pipeline_mode = #tpu.pipeline_mode<synchronous>, transform_indices = @transform_2, window_bounds = array<i64: 1, 64>}, {transform_indices = @transform_3, window_bounds = array<i64: 48, 64>}]} {
    %c0 = arith.constant 0 : index
    %c0_0 = arith.constant 0 : index
    %0 = vector.load %arg1[%c0, %c0_0] : memref<48x64xf32, #tpu.memory_space<vmem>>, vector<48x64xf32>
    %1 = arith.truncf %0 : vector<48x64xf32> to vector<48x64xbf16>
    %c0_1 = arith.constant 0 : index
    %c0_2 = arith.constant 0 : index
    %2 = vector.load %arg2[%c0_1, %c0_2] : memref<64x64xbf16, #tpu.memory_space<vmem>>, vector<64x64xbf16>
    %cst = arith.constant dense<0.000000e+00> : vector<48x64xf32>
    %3 = tpu.matmul %1, %2, %cst {dimension_numbers = #tpu.dot_dimension_numbers<[1], [0], [0], [1], [0, 0, 1, 1], [], []>} : vector<48x64xbf16>, vector<64x64xbf16>, vector<48x64xf32> -> vector<48x64xf32>
    %c0_3 = arith.constant 0 : index
    %c0_4 = arith.constant 0 : index
    %4 = vector.load %arg3[%c0_3, %c0_4] : memref<1x64xf32, #tpu.memory_space<vmem>>, vector<1x64xf32>
    %5 = vector.broadcast %4 : vector<1x64xf32> to vector<48x64xf32>
    %6 = arith.addf %3, %5 : vector<48x64xf32>
    %c0_5 = arith.constant 0 : index
    %c0_6 = arith.constant 0 : index
    %7 = vector.load %arg4[%c0_5, %c0_6] : memref<48x64xf32, #tpu.memory_space<vmem>>, vector<48x64xf32>
    tpu.vector_store %arg4[%c0_5, %c0_6], %6 {strides = array<i32>} : memref<48x64xf32, #tpu.memory_space<vmem>>, vector<48x64xf32>,
    return
  }
  func.func @transform_0(%arg0: i32) -> (i32, i32) {
    %c0_i32 = arith.constant 0 : i32
    %c0_i32_0 = arith.constant 0 : i32
    return %arg0, %c0_i32 : i32, i32
  }
  func.func @transform_1(%arg0: i32) -> (i32, i32) {
    %c0_i32 = arith.constant 0 : i32
    %c0_i32_0 = arith.constant 0 : i32
    %c0_i32_1 = arith.constant 0 : i32
    return %c0_i32, %c0_i32_0 : i32, i32
  }
  func.func @transform_2(%arg0: i32) -> (i32, i32) {
    %c0_i32 = arith.constant 0 : i32
    %c0_i32_0 = arith.constant 0 : i32
    %c0_i32_1 = arith.constant 0 : i32
    return %c0_i32, %c0_i32_0 : i32, i32
  }
  func.func @transform_3(%arg0: i32) -> (i32, i32) {
    %c0_i32 = arith.constant 0 : i32
    %c0_i32_0 = arith.constant 0 : i32
    return %arg0, %c0_i32 : i32, i32
  }
}

module attributes {stable_mosaic.version = 11 : i64} {
  func.func @_rpe_attn_kernel(%arg0: i32, %arg1: i32, %arg2: memref<1x8x64xf32, #tpu.memory_space<vmem>>, %arg3: memref<1x24x64xf32, #tpu.memory_space<vmem>>, %arg4: memref<1x24x64xf32, #tpu.memory_space<vmem>>, %arg5: memref<1x8x24x64xf32, #tpu.memory_space<vmem>>, %arg6: memref<64x64xbf16, #tpu.memory_space<vmem>>, %arg7: memref<1x64xf32, #tpu.memory_space<vmem>>, %arg8: memref<1x8x64xf32, #tpu.memory_space<vmem>>, %arg9: memref<1x4x8x24xf32, #tpu.memory_space<vmem>>) attributes {dimension_semantics = [#tpu.dimension_semantics<parallel>, #tpu.dimension_semantics<parallel>], iteration_bounds = array<i64: 2, 3>, scalar_prefetch = 0 : i64, scratch_operands = 0 : i64, tpu.core_type = #tpu.core_type<tc>, window_params = [{transform_indices = @transform_0, window_bounds = array<i64: 1, 8, 64>}, {transform_indices = @transform_1, window_bounds = array<i64: 1, 24, 64>}, {transform_indices = @transform_2, window_bounds = array<i64: 1, 24, 64>}, {transform_indices = @transform_3, window_bounds = array<i64: 1, 8, 24, 64>}, {pipeline_mode = #tpu.pipeline_mode<synchronous>, transform_indices = @transform_4, window_bounds = array<i64: 64, 64>}, {pipeline_mode = #tpu.pipeline_mode<synchronous>, transform_indices = @transform_5, window_bounds = array<i64: 1, 64>}, {transform_indices = @transform_6, window_bounds = array<i64: 1, 8, 64>}, {transform_indices = @transform_7, window_bounds = array<i64: 1, 4, 8, 24>}]} {
    %c0 = arith.constant 0 : index
    %c0_0 = arith.constant 0 : index
    %c0_1 = arith.constant 0 : index
    %0 = vector.load %arg2[%c0, %c0_0, %c0_1] : memref<1x8x64xf32, #tpu.memory_space<vmem>>, vector<1x8x64xf32>
    %1 = vector.shape_cast %0 : vector<1x8x64xf32> to vector<8x64xf32>
    %2 = arith.truncf %1 : vector<8x64xf32> to vector<8x64xbf16>
    %c0_2 = arith.constant 0 : index
    %c0_3 = arith.constant 0 : index
    %c0_4 = arith.constant 0 : index
    %3 = vector.load %arg3[%c0_2, %c0_3, %c0_4] : memref<1x24x64xf32, #tpu.memory_space<vmem>>, vector<1x24x64xf32>
    %4 = vector.shape_cast %3 : vector<1x24x64xf32> to vector<24x64xf32>
    %5 = arith.truncf %4 : vector<24x64xf32> to vector<24x64xbf16>
    %c0_5 = arith.constant 0 : index
    %c0_6 = arith.constant 0 : index
    %c0_7 = arith.constant 0 : index
    %6 = vector.load %arg4[%c0_5, %c0_6, %c0_7] : memref<1x24x64xf32, #tpu.memory_space<vmem>>, vector<1x24x64xf32>
    %7 = vector.shape_cast %6 : vector<1x24x64xf32> to vector<24x64xf32>
    %8 = arith.truncf %7 : vector<24x64xf32> to vector<24x64xbf16>
    %c0_8 = arith.constant 0 : index
    %c0_9 = arith.constant 0 : index
    %c0_10 = arith.constant 0 : index
    %c0_11 = arith.constant 0 : index
    %9 = vector.load %arg5[%c0_8, %c0_9, %c0_10, %c0_11] : memref<1x8x24x64xf32, #tpu.memory_space<vmem>>, vector<1x8x24x64xf32>
    %10 = vector.shape_cast %9 : vector<1x8x24x64xf32> to vector<8x24x64xf32>
    %11 = vector.shape_cast %10 : vector<8x24x64xf32> to vector<192x64xf32>
    %12 = arith.truncf %11 : vector<192x64xf32> to vector<192x64xbf16>
    %c0_12 = arith.constant 0 : index
    %c0_13 = arith.constant 0 : index
    %13 = vector.load %arg6[%c0_12, %c0_13] : memref<64x64xbf16, #tpu.memory_space<vmem>>, vector<64x64xbf16>
    %cst = arith.constant dense<0.000000e+00> : vector<192x64xf32>
    %14 = tpu.matmul %12, %13, %cst {dimension_numbers = #tpu.dot_dimension_numbers<[1], [0], [0], [1], [0, 0, 1, 1], [], []>} : vector<192x64xbf16>, vector<64x64xbf16>, vector<192x64xf32> -> vector<192x64xf32>
    %c0_14 = arith.constant 0 : index
    %c0_15 = arith.constant 0 : index
    %15 = vector.load %arg7[%c0_14, %c0_15] : memref<1x64xf32, #tpu.memory_space<vmem>>, vector<1x64xf32>
    %16 = vector.broadcast %15 : vector<1x64xf32> to vector<192x64xf32>
    %17 = arith.addf %14, %16 : vector<192x64xf32>
    %18 = vector.shape_cast %17 : vector<192x64xf32> to vector<8x24x64xf32>
    %19 = vector.shape_cast %1 : vector<8x64xf32> to vector<8x1x64xf32>
    %20 = vector.broadcast %19 : vector<8x1x64xf32> to vector<8x24x64xf32>
    %21 = arith.mulf %18, %20 : vector<8x24x64xf32>
    %22 = vector.extract_strided_slice %21 {offsets = [0, 0, 0], sizes = [8, 24, 16], strides = [1, 1, 1]} : vector<8x24x64xf32> to vector<8x24x16xf32>
    %cst_16 = arith.constant dense<0.000000e+00> : vector<8x24xf32>
    %23 = vector.multi_reduction <add>, %22, %cst_16 [2] : vector<8x24x16xf32> to vector<8x24xf32>
    %24 = vector.extract_strided_slice %2 {offsets = [0, 0], sizes = [8, 16], strides = [1, 1]} : vector<8x64xbf16> to vector<8x16xbf16>
    %25 = vector.extract_strided_slice %5 {offsets = [0, 0], sizes = [24, 16], strides = [1, 1]} : vector<24x64xbf16> to vector<24x16xbf16>
    %cst_17 = arith.constant dense<0.000000e+00> : vector<8x24xf32>
    %26 = tpu.matmul %24, %25, %cst_17 {dimension_numbers = #tpu.dot_dimension_numbers<[1], [1], [0], [0], [0, 0, 1, 0], [], []>} : vector<8x16xbf16>, vector<24x16xbf16>, vector<8x24xf32> -> vector<8x24xf32>
    %27 = arith.addf %26, %23 : vector<8x24xf32>
    %cst_18 = arith.constant dense<0xFF800000> : vector<8xf32>
    %28 = vector.multi_reduction <maximumf>, %27, %cst_18 [1] : vector<8x24xf32> to vector<8xf32>
    %29 = vector.shape_cast %28 : vector<8xf32> to vector<8x1xf32>
    %30 = vector.broadcast %29 : vector<8x1xf32> to vector<8x24xf32>
    %31 = arith.subf %27, %30 : vector<8x24xf32>
    %32 = math.exp %31 : vector<8x24xf32>
    %cst_19 = arith.constant dense<0.000000e+00> : vector<8xf32>
    %33 = vector.multi_reduction <add>, %32, %cst_19 [1] : vector<8x24xf32> to vector<8xf32>
    %34 = vector.shape_cast %33 : vector<8xf32> to vector<8x1xf32>
    %35 = tpu.reciprocal %34 {approx = true} : vector<8x1xf32> -> vector<8x1xf32>
    %36 = vector.broadcast %35 : vector<8x1xf32> to vector<8x24xf32>
    %37 = arith.mulf %32, %36 : vector<8x24xf32>
    %38 = arith.truncf %37 : vector<8x24xf32> to vector<8x24xbf16>
    %39 = vector.extract_strided_slice %8 {offsets = [0, 0], sizes = [24, 16], strides = [1, 1]} : vector<24x64xbf16> to vector<24x16xbf16>
    %cst_20 = arith.constant dense<0.000000e+00> : vector<8x16xf32>
    %40 = tpu.matmul %38, %39, %cst_20 {dimension_numbers = #tpu.dot_dimension_numbers<[1], [0], [0], [1], [0, 0, 1, 1], [], []>} : vector<8x24xbf16>, vector<24x16xbf16>, vector<8x16xf32> -> vector<8x16xf32>
    %c0_21 = arith.constant 0 : index
    %c0_22 = arith.constant 0 : index
    %c0_23 = arith.constant 0 : index
    %41 = vector.load %arg8[%c0_21, %c0_22, %c0_23] : memref<1x8x64xf32, #tpu.memory_space<vmem>>, vector<1x8x16xf32>
    %42 = vector.shape_cast %41 : vector<1x8x16xf32> to vector<8x16xf32>
    %43 = vector.shape_cast %40 : vector<8x16xf32> to vector<1x8x16xf32>
    tpu.vector_store %arg8[%c0_21, %c0_22, %c0_23], %43 {strides = array<i32>} : memref<1x8x64xf32, #tpu.memory_space<vmem>>, vector<1x8x16xf32>,
    %c0_24 = arith.constant 0 : index
    %c0_25 = arith.constant 0 : index
    %c0_26 = arith.constant 0 : index
    %c0_27 = arith.constant 0 : index
    %44 = vector.load %arg9[%c0_24, %c0_25, %c0_26, %c0_27] : memref<1x4x8x24xf32, #tpu.memory_space<vmem>>, vector<1x1x8x24xf32>
    %45 = vector.shape_cast %44 : vector<1x1x8x24xf32> to vector<8x24xf32>
    %46 = vector.shape_cast %37 : vector<8x24xf32> to vector<1x1x8x24xf32>
    tpu.vector_store %arg9[%c0_24, %c0_25, %c0_26, %c0_27], %46 {strides = array<i32>} : memref<1x4x8x24xf32, #tpu.memory_space<vmem>>, vector<1x1x8x24xf32>,
    %47 = vector.extract_strided_slice %21 {offsets = [0, 0, 16], sizes = [8, 24, 16], strides = [1, 1, 1]} : vector<8x24x64xf32> to vector<8x24x16xf32>
    %cst_28 = arith.constant dense<0.000000e+00> : vector<8x24xf32>
    %48 = vector.multi_reduction <add>, %47, %cst_28 [2] : vector<8x24x16xf32> to vector<8x24xf32>
    %49 = vector.extract_strided_slice %2 {offsets = [0, 16], sizes = [8, 16], strides = [1, 1]} : vector<8x64xbf16> to vector<8x16xbf16>
    %50 = vector.extract_strided_slice %5 {offsets = [0, 16], sizes = [24, 16], strides = [1, 1]} : vector<24x64xbf16> to vector<24x16xbf16>
    %cst_29 = arith.constant dense<0.000000e+00> : vector<8x24xf32>
    %51 = tpu.matmul %49, %50, %cst_29 {dimension_numbers = #tpu.dot_dimension_numbers<[1], [1], [0], [0], [0, 0, 1, 0], [], []>} : vector<8x16xbf16>, vector<24x16xbf16>, vector<8x24xf32> -> vector<8x24xf32>
    %52 = arith.addf %51, %48 : vector<8x24xf32>
    %cst_30 = arith.constant dense<0xFF800000> : vector<8xf32>
    %53 = vector.multi_reduction <maximumf>, %52, %cst_30 [1] : vector<8x24xf32> to vector<8xf32>
    %54 = vector.shape_cast %53 : vector<8xf32> to vector<8x1xf32>
    %55 = vector.broadcast %54 : vector<8x1xf32> to vector<8x24xf32>
    %56 = arith.subf %52, %55 : vector<8x24xf32>
    %57 = math.exp %56 : vector<8x24xf32>
    %cst_31 = arith.constant dense<0.000000e+00> : vector<8xf32>
    %58 = vector.multi_reduction <add>, %57, %cst_31 [1] : vector<8x24xf32> to vector<8xf32>
    %59 = vector.shape_cast %58 : vector<8xf32> to vector<8x1xf32>
    %60 = tpu.reciprocal %59 {approx = true} : vector<8x1xf32> -> vector<8x1xf32>
    %61 = vector.broadcast %60 : vector<8x1xf32> to vector<8x24xf32>
    %62 = arith.mulf %57, %61 : vector<8x24xf32>
    %63 = arith.truncf %62 : vector<8x24xf32> to vector<8x24xbf16>
    %64 = vector.extract_strided_slice %8 {offsets = [0, 16], sizes = [24, 16], strides = [1, 1]} : vector<24x64xbf16> to vector<24x16xbf16>
    %cst_32 = arith.constant dense<0.000000e+00> : vector<8x16xf32>
    %65 = tpu.matmul %63, %64, %cst_32 {dimension_numbers = #tpu.dot_dimension_numbers<[1], [0], [0], [1], [0, 0, 1, 1], [], []>} : vector<8x24xbf16>, vector<24x16xbf16>, vector<8x16xf32> -> vector<8x16xf32>
    %c0_33 = arith.constant 0 : index
    %c0_34 = arith.constant 0 : index
    %c16 = arith.constant 16 : index
    %66 = vector.load %arg8[%c0_33, %c0_34, %c16] : memref<1x8x64xf32, #tpu.memory_space<vmem>>, vector<1x8x16xf32>
    %67 = vector.shape_cast %66 : vector<1x8x16xf32> to vector<8x16xf32>
    %68 = vector.shape_cast %65 : vector<8x16xf32> to vector<1x8x16xf32>
    tpu.vector_store %arg8[%c0_33, %c0_34, %c16], %68 {strides = array<i32>} : memref<1x8x64xf32, #tpu.memory_space<vmem>>, vector<1x8x16xf32>,
    %c0_35 = arith.constant 0 : index
    %c1 = arith.constant 1 : index
    %c0_36 = arith.constant 0 : index
    %c0_37 = arith.constant 0 : index
    %69 = vector.load %arg9[%c0_35, %c1, %c0_36, %c0_37] : memref<1x4x8x24xf32, #tpu.memory_space<vmem>>, vector<1x1x8x24xf32>
    %70 = vector.shape_cast %69 : vector<1x1x8x24xf32> to vector<8x24xf32>
    %71 = vector.shape_cast %62 : vector<8x24xf32> to vector<1x1x8x24xf32>
    tpu.vector_store %arg9[%c0_35, %c1, %c0_36, %c0_37], %71 {strides = array<i32>} : memref<1x4x8x24xf32, #tpu.memory_space<vmem>>, vector<1x1x8x24xf32>,
    %72 = vector.extract_strided_slice %21 {offsets = [0, 0, 32], sizes = [8, 24, 16], strides = [1, 1, 1]} : vector<8x24x64xf32> to vector<8x24x16xf32>
    %cst_38 = arith.constant dense<0.000000e+00> : vector<8x24xf32>
    %73 = vector.multi_reduction <add>, %72, %cst_38 [2] : vector<8x24x16xf32> to vector<8x24xf32>
    %74 = vector.extract_strided_slice %2 {offsets = [0, 32], sizes = [8, 16], strides = [1, 1]} : vector<8x64xbf16> to vector<8x16xbf16>
    %75 = vector.extract_strided_slice %5 {offsets = [0, 32], sizes = [24, 16], strides = [1, 1]} : vector<24x64xbf16> to vector<24x16xbf16>
    %cst_39 = arith.constant dense<0.000000e+00> : vector<8x24xf32>
    %76 = tpu.matmul %74, %75, %cst_39 {dimension_numbers = #tpu.dot_dimension_numbers<[1], [1], [0], [0], [0, 0, 1, 0], [], []>} : vector<8x16xbf16>, vector<24x16xbf16>, vector<8x24xf32> -> vector<8x24xf32>
    %77 = arith.addf %76, %73 : vector<8x24xf32>
    %cst_40 = arith.constant dense<0xFF800000> : vector<8xf32>
    %78 = vector.multi_reduction <maximumf>, %77, %cst_40 [1] : vector<8x24xf32> to vector<8xf32>
    %79 = vector.shape_cast %78 : vector<8xf32> to vector<8x1xf32>
    %80 = vector.broadcast %79 : vector<8x1xf32> to vector<8x24xf32>
    %81 = arith.subf %77, %80 : vector<8x24xf32>
    %82 = math.exp %81 : vector<8x24xf32>
    %cst_41 = arith.constant dense<0.000000e+00> : vector<8xf32>
    %83 = vector.multi_reduction <add>, %82, %cst_41 [1] : vector<8x24xf32> to vector<8xf32>
    %84 = vector.shape_cast %83 : vector<8xf32> to vector<8x1xf32>
    %85 = tpu.reciprocal %84 {approx = true} : vector<8x1xf32> -> vector<8x1xf32>
    %86 = vector.broadcast %85 : vector<8x1xf32> to vector<8x24xf32>
    %87 = arith.mulf %82, %86 : vector<8x24xf32>
    %88 = arith.truncf %87 : vector<8x24xf32> to vector<8x24xbf16>
    %89 = vector.extract_strided_slice %8 {offsets = [0, 32], sizes = [24, 16], strides = [1, 1]} : vector<24x64xbf16> to vector<24x16xbf16>
    %cst_42 = arith.constant dense<0.000000e+00> : vector<8x16xf32>
    %90 = tpu.matmul %88, %89, %cst_42 {dimension_numbers = #tpu.dot_dimension_numbers<[1], [0], [0], [1], [0, 0, 1, 1], [], []>} : vector<8x24xbf16>, vector<24x16xbf16>, vector<8x16xf32> -> vector<8x16xf32>
    %c0_43 = arith.constant 0 : index
    %c0_44 = arith.constant 0 : index
    %c32 = arith.constant 32 : index
    %91 = vector.load %arg8[%c0_43, %c0_44, %c32] : memref<1x8x64xf32, #tpu.memory_space<vmem>>, vector<1x8x16xf32>
    %92 = vector.shape_cast %91 : vector<1x8x16xf32> to vector<8x16xf32>
    %93 = vector.shape_cast %90 : vector<8x16xf32> to vector<1x8x16xf32>
    tpu.vector_store %arg8[%c0_43, %c0_44, %c32], %93 {strides = array<i32>} : memref<1x8x64xf32, #tpu.memory_space<vmem>>, vector<1x8x16xf32>,
    %c0_45 = arith.constant 0 : index
    %c2 = arith.constant 2 : index
    %c0_46 = arith.constant 0 : index
    %c0_47 = arith.constant 0 : index
    %94 = vector.load %arg9[%c0_45, %c2, %c0_46, %c0_47] : memref<1x4x8x24xf32, #tpu.memory_space<vmem>>, vector<1x1x8x24xf32>
    %95 = vector.shape_cast %94 : vector<1x1x8x24xf32> to vector<8x24xf32>
    %96 = vector.shape_cast %87 : vector<8x24xf32> to vector<1x1x8x24xf32>
    tpu.vector_store %arg9[%c0_45, %c2, %c0_46, %c0_47], %96 {strides = array<i32>} : memref<1x4x8x24xf32, #tpu.memory_space<vmem>>, vector<1x1x8x24xf32>,
    %97 = vector.extract_strided_slice %21 {offsets = [0, 0, 48], sizes = [8, 24, 16], strides = [1, 1, 1]} : vector<8x24x64xf32> to vector<8x24x16xf32>
    %cst_48 = arith.constant dense<0.000000e+00> : vector<8x24xf32>
    %98 = vector.multi_reduction <add>, %97, %cst_48 [2] : vector<8x24x16xf32> to vector<8x24xf32>
    %99 = vector.extract_strided_slice %2 {offsets = [0, 48], sizes = [8, 16], strides = [1, 1]} : vector<8x64xbf16> to vector<8x16xbf16>
    %100 = vector.extract_strided_slice %5 {offsets = [0, 48], sizes = [24, 16], strides = [1, 1]} : vector<24x64xbf16> to vector<24x16xbf16>
    %cst_49 = arith.constant dense<0.000000e+00> : vector<8x24xf32>
    %101 = tpu.matmul %99, %100, %cst_49 {dimension_numbers = #tpu.dot_dimension_numbers<[1], [1], [0], [0], [0, 0, 1, 0], [], []>} : vector<8x16xbf16>, vector<24x16xbf16>, vector<8x24xf32> -> vector<8x24xf32>
    %102 = arith.addf %101, %98 : vector<8x24xf32>
    %cst_50 = arith.constant dense<0xFF800000> : vector<8xf32>
    %103 = vector.multi_reduction <maximumf>, %102, %cst_50 [1] : vector<8x24xf32> to vector<8xf32>
    %104 = vector.shape_cast %103 : vector<8xf32> to vector<8x1xf32>
    %105 = vector.broadcast %104 : vector<8x1xf32> to vector<8x24xf32>
    %106 = arith.subf %102, %105 : vector<8x24xf32>
    %107 = math.exp %106 : vector<8x24xf32>
    %cst_51 = arith.constant dense<0.000000e+00> : vector<8xf32>
    %108 = vector.multi_reduction <add>, %107, %cst_51 [1] : vector<8x24xf32> to vector<8xf32>
    %109 = vector.shape_cast %108 : vector<8xf32> to vector<8x1xf32>
    %110 = tpu.reciprocal %109 {approx = true} : vector<8x1xf32> -> vector<8x1xf32>
    %111 = vector.broadcast %110 : vector<8x1xf32> to vector<8x24xf32>
    %112 = arith.mulf %107, %111 : vector<8x24xf32>
    %113 = arith.truncf %112 : vector<8x24xf32> to vector<8x24xbf16>
    %114 = vector.extract_strided_slice %8 {offsets = [0, 48], sizes = [24, 16], strides = [1, 1]} : vector<24x64xbf16> to vector<24x16xbf16>
    %cst_52 = arith.constant dense<0.000000e+00> : vector<8x16xf32>
    %115 = tpu.matmul %113, %114, %cst_52 {dimension_numbers = #tpu.dot_dimension_numbers<[1], [0], [0], [1], [0, 0, 1, 1], [], []>} : vector<8x24xbf16>, vector<24x16xbf16>, vector<8x16xf32> -> vector<8x16xf32>
    %c0_53 = arith.constant 0 : index
    %c0_54 = arith.constant 0 : index
    %c48 = arith.constant 48 : index
    %116 = vector.load %arg8[%c0_53, %c0_54, %c48] : memref<1x8x64xf32, #tpu.memory_space<vmem>>, vector<1x8x16xf32>
    %117 = vector.shape_cast %116 : vector<1x8x16xf32> to vector<8x16xf32>
    %118 = vector.shape_cast %115 : vector<8x16xf32> to vector<1x8x16xf32>
    tpu.vector_store %arg8[%c0_53, %c0_54, %c48], %118 {strides = array<i32>} : memref<1x8x64xf32, #tpu.memory_space<vmem>>, vector<1x8x16xf32>,
    %c0_55 = arith.constant 0 : index
    %c3 = arith.constant 3 : index
    %c0_56 = arith.constant 0 : index
    %c0_57 = arith.constant 0 : index
    %119 = vector.load %arg9[%c0_55, %c3, %c0_56, %c0_57] : memref<1x4x8x24xf32, #tpu.memory_space<vmem>>, vector<1x1x8x24xf32>
    %120 = vector.shape_cast %119 : vector<1x1x8x24xf32> to vector<8x24xf32>
    %121 = vector.shape_cast %112 : vector<8x24xf32> to vector<1x1x8x24xf32>
    tpu.vector_store %arg9[%c0_55, %c3, %c0_56, %c0_57], %121 {strides = array<i32>} : memref<1x4x8x24xf32, #tpu.memory_space<vmem>>, vector<1x1x8x24xf32>,
    return
  }
  func.func @transform_0(%arg0: i32, %arg1: i32) -> (i32, i32, i32) {
    %c0_i32 = arith.constant 0 : i32
    %c0_i32_0 = arith.constant 0 : i32
    return %arg0, %arg1, %c0_i32 : i32, i32, i32
  }
  func.func @transform_1(%arg0: i32, %arg1: i32) -> (i32, i32, i32) {
    %c0_i32 = arith.constant 0 : i32
    %c0_i32_0 = arith.constant 0 : i32
    %c0_i32_1 = arith.constant 0 : i32
    return %arg0, %c0_i32, %c0_i32_0 : i32, i32, i32
  }
  func.func @transform_2(%arg0: i32, %arg1: i32) -> (i32, i32, i32) {
    %c0_i32 = arith.constant 0 : i32
    %c0_i32_0 = arith.constant 0 : i32
    %c0_i32_1 = arith.constant 0 : i32
    return %arg0, %c0_i32, %c0_i32_0 : i32, i32, i32
  }
  func.func @transform_3(%arg0: i32, %arg1: i32) -> (i32, i32, i32, i32) {
    %c0_i32 = arith.constant 0 : i32
    %c0_i32_0 = arith.constant 0 : i32
    %c0_i32_1 = arith.constant 0 : i32
    return %arg0, %arg1, %c0_i32, %c0_i32_0 : i32, i32, i32, i32
  }
  func.func @transform_4(%arg0: i32, %arg1: i32) -> (i32, i32) {
    %c0_i32 = arith.constant 0 : i32
    %c0_i32_0 = arith.constant 0 : i32
    %c0_i32_1 = arith.constant 0 : i32
    return %c0_i32, %c0_i32_0 : i32, i32
  }
  func.func @transform_5(%arg0: i32, %arg1: i32) -> (i32, i32) {
    %c0_i32 = arith.constant 0 : i32
    %c0_i32_0 = arith.constant 0 : i32
    %c0_i32_1 = arith.constant 0 : i32
    return %c0_i32, %c0_i32_0 : i32, i32
  }
  func.func @transform_6(%arg0: i32, %arg1: i32) -> (i32, i32, i32) {
    %c0_i32 = arith.constant 0 : i32
    %c0_i32_0 = arith.constant 0 : i32
    return %arg0, %arg1, %c0_i32 : i32, i32, i32
  }
  func.func @transform_7(%arg0: i32, %arg1: i32) -> (i32, i32, i32, i32) {
    %c0_i32 = arith.constant 0 : i32
    %c0_i32_0 = arith.constant 0 : i32
    %c0_i32_1 = arith.constant 0 : i32
    return %arg0, %c0_i32, %arg1, %c0_i32_0 : i32, i32, i32, i32
  }
}

</mosaic_0001>

<llo_original>
// kernel: rpe_multihead_attention.5
$region0: #{rpe_multihead_attention.5}
  #allocation0 [shape = 'u32[]', space=smem, size = 0x4, offset = 0x4, fixed_abs, tag = 'smem constant byte address 0x4 - core index']
  #allocation1 [shape = 'u32[144,128]{1,0:T(1,128)}', space=vmem, size = 0x12000, scoped, tag = 'internal scratch']
  %s0 = inlined_call_operand.vmem [shape: f32[48,64], index: 0, kind: input, shape index: {}]
  %s1 = inlined_call_operand.vmem [shape: bf16[64,64], index: 1, kind: input, shape index: {}]
  %s2 = inlined_call_operand.vmem [shape: f32[1,64], index: 2, kind: input, shape index: {}]
  %s3 = inlined_call_operand.vmem [shape: f32[48,64], index: 3, kind: output, shape index: {}]
  %s4 = sld [smem:[#allocation0]]
  $region22: #{rpe_multihead_attention.5} parent=0
    _
  %s6 = ssub.s32 1, %s4
  %s7 = scalar_select 0, %s6, %s4
  // Predicated region
  $region2: #{rpe_multihead_attention.5} parent=0 // pred_check
    _
  $region3: #{rpe_multihead_attention.5} parent=0 // pred_check_branch
    %9 = sbr.rel (0) target = $region5
  $region4: #{rpe_multihead_attention.5} parent=0 // pred_region
    _
  $region5: #{rpe_multihead_attention.5} parent=0 // pred_fallthru
    _
  // Predicated region
  $region6: #{rpe_multihead_attention.5} parent=0 // pred_check
    _
  $region7: #{rpe_multihead_attention.5} parent=0 // pred_check_branch
    %11 = sbr.rel (0) target = $region9
  $region8: #{rpe_multihead_attention.5} parent=0 // pred_region
    _
  $region9: #{rpe_multihead_attention.5} parent=0 // pred_fallthru
    _
  // Predicated region
  $region10: #{rpe_multihead_attention.5} parent=0 // pred_check
    _
  $region11: #{rpe_multihead_attention.5} parent=0 // pred_check_branch
    %13 = sbr.rel (0) target = $region13
  $region12: #{rpe_multihead_attention.5} parent=0 // pred_region
    _
  $region13: #{rpe_multihead_attention.5} parent=0 // pred_fallthru
    _
  %v15 = vld [vmem:[%s0] sm:$0xff]
  %v16 = vld [vmem:[%s0 + $0x8] sm:$0xff]
  %v17 = vld [vmem:[%s0 + $0x10] sm:$0xff]
  %v18 = vld [vmem:[%s0 + $0x18] sm:$0xff]
  %v19 = vld [vmem:[%s0 + $0x20] sm:$0xff]
  %v20 = vld [vmem:[%s0 + $0x28] sm:$0xff]
  %v21 = vpack.c.bf16 %v16, %v15
  %v22 = vpack.c.bf16 %v18, %v17
  %v23 = vpack.c.bf16 %v20, %v19
  %v24 = vld [vmem:[%s1] sm:$0xf]
  %v25 = vld [vmem:[%s1 + $0x4] sm:$0xf]
  %v26 = vld [vmem:[%s1 + $0x8] sm:$0xf]
  %v27 = vld [vmem:[%s1 + $0xc] sm:$0xf]
  %v28 = vld [vmem:[%s1 + $0x10] sm:$0xf]
  %v29 = vld [vmem:[%s1 + $0x14] sm:$0xf]
  %v30 = vld [vmem:[%s1 + $0x18] sm:$0xf]
  %v31 = vld [vmem:[%s1 + $0x1c] sm:$0xf]
  %v32 = vld [vmem:[%s2] sm:$0x1]
  %v34 = vlaneseq
  %v35 = vshrl.u32 %v34, 7
  %v36 = vsub.s32 0, %v35
  %v37 = vrot.slane %v32, %v36
  %v47 = vunpack.c.l.b16 %v24
  %v48 = vunpack.c.l.b16 %v25
  %v49 = vunpack.c.l.b16 %v26
  %v50 = vunpack.c.l.b16 %v27
  %v51 = vunpack.c.l.b16 %v28
  %v52 = vunpack.c.l.b16 %v29
  %v53 = vunpack.c.l.b16 %v30
  %v54 = vunpack.c.l.b16 %v31
  %v55 = vpack.c.b16 %v48, %v47
  %v56 = vpack.c.b16 %v50, %v49
  %v57 = vpack.c.b16 %v52, %v51
  %v58 = vpack.c.b16 %v54, %v53
  %vm63 = vcmask 523264
  %v65 = vsel %vm63, %v21, 0
  %v68 = vsel %vm63, %v22, 0
  %v71 = vsel %vm63, %v23, 0
  %73 = vmatprep.subr.bf16.mxu0 0
  %74 = vmatpush1.bf16.msra.mxu0 0
  %75 = vmatprep.subr.bf16.mxu0 0
  %76 = vmatpush1.bf16.msra.mxu0 0
  %77 = vmatprep.subr.bf16.mxu0 0
  %78 = vmatpush1.bf16.msra.mxu0 0
  %79 = vmatprep.subr.bf16.mxu0 0
  %80 = vmatpush1.bf16.msra.mxu0 0
  %81 = vmatprep.subr.bf16.mxu0 0
  %82 = vmatpush1.bf16.msra.mxu0 %v58
  %83 = vmatprep.subr.bf16.mxu0 0
  %84 = vmatpush1.bf16.msra.mxu0 %v57
  %85 = vmatprep.subr.bf16.mxu0 0
  %86 = vmatpush1.bf16.msra.mxu0 %v56
  %87 = vmatprep.subr.bf16.mxu0 0
  %88 = vmatpush1.bf16.msra.mxu0 %v55
  %89 = vmatprep.subr.bf16.mxu0 0
  %90 = vmatpush2.bf16.msra.mxu0 0
  %91 = vmatprep.subr.bf16.mxu0 0
  %92 = vmatpush2.bf16.msra.mxu0 0
  %93 = vmatprep.subr.bf16.mxu0 0
  %94 = vmatpush2.bf16.msra.mxu0 0
  %95 = vmatprep.subr.bf16.mxu0 0
  %96 = vmatpush2.bf16.msra.mxu0 0
  %97 = vmatprep.subr.bf16.mxu0 0
  %98 = vmatpush2.bf16.msra.mxu0 0
  %99 = vmatprep.subr.bf16.mxu0 0
  %100 = vmatpush2.bf16.msra.mxu0 0
  %101 = vmatprep.subr.bf16.mxu0 0
  %102 = vmatpush2.bf16.msra.mxu0 0
  %103 = vmatprep.subr.bf16.mxu0 0
  %104 = vmatpush2.bf16.msra.mxu0 0
  %105 = vmatprep.mubr.bf16.mxu0 0
  %106 = vmatmul.mubr.bf16.gmra.mxu0 %v65
  %v107 = vpop.f32.mrf.mxu0
  %v108 = vadd.f32 %v37, %v107
  %v109 = vpop.f32.mrf.mxu0
  %v110 = vpop.f32.mrf.mxu0
  %v111 = vadd.f32 %v37, %v110
  %v112 = vpop.f32.mrf.mxu0
  %113 = vmatprep.mubr.bf16.mxu0 0
  %114 = vmatmul.mubr.bf16.gmra.mxu0 %v68
  %v115 = vpop.f32.mrf.mxu0
  %v116 = vadd.f32 %v37, %v115
  %v117 = vpop.f32.mrf.mxu0
  %v118 = vpop.f32.mrf.mxu0
  %v119 = vadd.f32 %v37, %v118
  %v120 = vpop.f32.mrf.mxu0
  %121 = vmatprep.mubr.bf16.mxu0 0
  %122 = vmatmul.mubr.bf16.gmra.mxu0 %v71
  %v123 = vpop.f32.mrf.mxu0
  %v124 = vadd.f32 %v37, %v123
  %v125 = vpop.f32.mrf.mxu0
  %v126 = vpop.f32.mrf.mxu0
  %v127 = vadd.f32 %v37, %v126
  %v128 = vpop.f32.mrf.mxu0
  %129 = vdwg.mxu0
  %130 = vst.msk [vmem:[%s3] sm:$0xff] %vm63, %v108
  %131 = vst.msk [vmem:[%s3 + $0x8] sm:$0xff] %vm63, %v111
  %132 = vst.msk [vmem:[%s3 + $0x10] sm:$0xff] %vm63, %v116
  %133 = vst.msk [vmem:[%s3 + $0x18] sm:$0xff] %vm63, %v119
  %134 = vst.msk [vmem:[%s3 + $0x20] sm:$0xff] %vm63, %v124
  %135 = vst.msk [vmem:[%s3 + $0x28] sm:$0xff] %vm63, %v127
  // Predicated region
  $region14: #{rpe_multihead_attention.5} parent=0 // pred_check
    _
  $region15: #{rpe_multihead_attention.5} parent=0 // pred_check_branch
    %137 = sbr.rel (0) target = $region17
  $region16: #{rpe_multihead_attention.5} parent=0 // pred_region
    _
  $region17: #{rpe_multihead_attention.5} parent=0 // pred_fallthru
    _
  // Predicated region
  $region18: #{rpe_multihead_attention.5} parent=0 // pred_check
    _
  $region19: #{rpe_multihead_attention.5} parent=0 // pred_check_branch
    %139 = sbr.rel (0) target = $region21
  $region20: #{rpe_multihead_attention.5} parent=0 // pred_region
    _
  $region21: #{rpe_multihead_attention.5} parent=0 // pred_fallthru
    _

// kernel: rpe_multihead_attention.4
$region0: #{rpe_multihead_attention.4}
  #allocation0 [shape = 'u32[]', space=smem, size = 0x4, offset = 0x4, fixed_abs, tag = 'smem constant byte address 0x4 - core index']
  #allocation1 [shape = 'u32[144,128]{1,0:T(1,128)}', space=vmem, size = 0x12000, scoped, tag = 'internal scratch']
  %s0 = inlined_call_operand.vmem [shape: f32[40,64], index: 0, kind: input, shape index: {}]
  %s1 = inlined_call_operand.vmem [shape: bf16[64,64], index: 1, kind: input, shape index: {}]
  %s2 = inlined_call_operand.vmem [shape: f32[1,64], index: 2, kind: input, shape index: {}]
  %s3 = inlined_call_operand.vmem [shape: f32[40,64], index: 3, kind: output, shape index: {}]
  %s4 = sld [smem:[#allocation0]]
  $region22: #{rpe_multihead_attention.4} parent=0
    _
  %s6 = ssub.s32 1, %s4
  %s7 = scalar_select 0, %s6, %s4
  // Predicated region
  $region2: #{rpe_multihead_attention.4} parent=0 // pred_check
    _
  $region3: #{rpe_multihead_attention.4} parent=0 // pred_check_branch
    %9 = sbr.rel (0) target = $region5
  $region4: #{rpe_multihead_attention.4} parent=0 // pred_region
    _
  $region5: #{rpe_multihead_attention.4} parent=0 // pred_fallthru
    _
  // Predicated region
  $region6: #{rpe_multihead_attention.4} parent=0 // pred_check
    _
  $region7: #{rpe_multihead_attention.4} parent=0 // pred_check_branch
    %11 = sbr.rel (0) target = $region9
  $region8: #{rpe_multihead_attention.4} parent=0 // pred_region
    _
  $region9: #{rpe_multihead_attention.4} parent=0 // pred_fallthru
    _
  // Predicated region
  $region10: #{rpe_multihead_attention.4} parent=0 // pred_check
    _
  $region11: #{rpe_multihead_attention.4} parent=0 // pred_check_branch
    %13 = sbr.rel (0) target = $region13
  $region12: #{rpe_multihead_attention.4} parent=0 // pred_region
    _
  $region13: #{rpe_multihead_attention.4} parent=0 // pred_fallthru
    _
  %v15 = vld [vmem:[%s0] sm:$0xff]
  %v16 = vld [vmem:[%s0 + $0x8] sm:$0xff]
  %v17 = vld [vmem:[%s0 + $0x10] sm:$0xff]
  %v18 = vld [vmem:[%s0 + $0x18] sm:$0xff]
  %v19 = vld [vmem:[%s0 + $0x20] sm:$0xff]
  %v20 = vpack.c.bf16 %v16, %v15
  %v21 = vpack.c.bf16 %v18, %v17
  %v22 = vpack.c.bf16 %v19, %v19
  %v23 = vld [vmem:[%s1] sm:$0xf]
  %v24 = vld [vmem:[%s1 + $0x4] sm:$0xf]
  %v25 = vld [vmem:[%s1 + $0x8] sm:$0xf]
  %v26 = vld [vmem:[%s1 + $0xc] sm:$0xf]
  %v27 = vld [vmem:[%s1 + $0x10] sm:$0xf]
  %v28 = vld [vmem:[%s1 + $0x14] sm:$0xf]
  %v29 = vld [vmem:[%s1 + $0x18] sm:$0xf]
  %v30 = vld [vmem:[%s1 + $0x1c] sm:$0xf]
  %v31 = vld [vmem:[%s2] sm:$0x1]
  %v33 = vlaneseq
  %v34 = vshrl.u32 %v33, 7
  %v35 = vsub.s32 0, %v34
  %v36 = vrot.slane %v31, %v35
  %v46 = vunpack.c.l.b16 %v23
  %v47 = vunpack.c.l.b16 %v24
  %v48 = vunpack.c.l.b16 %v25
  %v49 = vunpack.c.l.b16 %v26
  %v50 = vunpack.c.l.b16 %v27
  %v51 = vunpack.c.l.b16 %v28
  %v52 = vunpack.c.l.b16 %v29
  %v53 = vunpack.c.l.b16 %v30
  %v54 = vpack.c.b16 %v47, %v46
  %v55 = vpack.c.b16 %v49, %v48
  %v56 = vpack.c.b16 %v51, %v50
  %v57 = vpack.c.b16 %v53, %v52
  %vm62 = vcmask 523264
  %v64 = vsel %vm62, %v20, 0
  %v67 = vsel %vm62, %v21, 0
  %v70 = vsel %vm62, %v22, 0
  %72 = vmatprep.subr.bf16.mxu0 0
  %73 = vmatpush1.bf16.msra.mxu0 0
  %74 = vmatprep.subr.bf16.mxu0 0
  %75 = vmatpush1.bf16.msra.mxu0 0
  %76 = vmatprep.subr.bf16.mxu0 0
  %77 = vmatpush1.bf16.msra.mxu0 0
  %78 = vmatprep.subr.bf16.mxu0 0
  %79 = vmatpush1.bf16.msra.mxu0 0
  %80 = vmatprep.subr.bf16.mxu0 0
  %81 = vmatpush1.bf16.msra.mxu0 %v57
  %82 = vmatprep.subr.bf16.mxu0 0
  %83 = vmatpush1.bf16.msra.mxu0 %v56
  %84 = vmatprep.subr.bf16.mxu0 0
  %85 = vmatpush1.bf16.msra.mxu0 %v55
  %86 = vmatprep.subr.bf16.mxu0 0
  %87 = vmatpush1.bf16.msra.mxu0 %v54
  %88 = vmatprep.subr.bf16.mxu0 0
  %89 = vmatpush2.bf16.msra.mxu0 0
  %90 = vmatprep.subr.bf16.mxu0 0
  %91 = vmatpush2.bf16.msra.mxu0 0
  %92 = vmatprep.subr.bf16.mxu0 0
  %93 = vmatpush2.bf16.msra.mxu0 0
  %94 = vmatprep.subr.bf16.mxu0 0
  %95 = vmatpush2.bf16.msra.mxu0 0
  %96 = vmatprep.subr.bf16.mxu0 0
  %97 = vmatpush2.bf16.msra.mxu0 0
  %98 = vmatprep.subr.bf16.mxu0 0
  %99 = vmatpush2.bf16.msra.mxu0 0
  %100 = vmatprep.subr.bf16.mxu0 0
  %101 = vmatpush2.bf16.msra.mxu0 0
  %102 = vmatprep.subr.bf16.mxu0 0
  %103 = vmatpush2.bf16.msra.mxu0 0
  %104 = vmatprep.mubr.bf16.mxu0 0
  %105 = vmatmul.mubr.bf16.gmra.mxu0 %v64
  %v106 = vpop.f32.mrf.mxu0
  %v107 = vadd.f32 %v36, %v106
  %v108 = vpop.f32.mrf.mxu0
  %v109 = vpop.f32.mrf.mxu0
  %v110 = vadd.f32 %v36, %v109
  %v111 = vpop.f32.mrf.mxu0
  %112 = vmatprep.mubr.bf16.mxu0 0
  %113 = vmatmul.mubr.bf16.gmra.mxu0 %v67
  %v114 = vpop.f32.mrf.mxu0
  %v115 = vadd.f32 %v36, %v114
  %v116 = vpop.f32.mrf.mxu0
  %v117 = vpop.f32.mrf.mxu0
  %v118 = vadd.f32 %v36, %v117
  %v119 = vpop.f32.mrf.mxu0
  %120 = vmatprep.mubr.bf16.mxu0 0
  %121 = vmatmul.mubr.bf16.gmra.mxu0 %v70
  %v122 = vpop.f32.mrf.mxu0
  %v123 = vadd.f32 %v36, %v122
  %v124 = vpop.f32.mrf.mxu0
  %v125 = vpop.f32.mrf.mxu0
  %v126 = vpop.f32.mrf.mxu0
  %127 = vdwg.mxu0
  %128 = vst.msk [vmem:[%s3] sm:$0xff] %vm62, %v107
  %129 = vst.msk [vmem:[%s3 + $0x8] sm:$0xff] %vm62, %v110
  %130 = vst.msk [vmem:[%s3 + $0x10] sm:$0xff] %vm62, %v115
  %131 = vst.msk [vmem:[%s3 + $0x18] sm:$0xff] %vm62, %v118
  %132 = vst.msk [vmem:[%s3 + $0x20] sm:$0xff] %vm62, %v123
  // Predicated region
  $region14: #{rpe_multihead_attention.4} parent=0 // pred_check
    _
  $region15: #{rpe_multihead_attention.4} parent=0 // pred_check_branch
    %134 = sbr.rel (0) target = $region17
  $region16: #{rpe_multihead_attention.4} parent=0 // pred_region
    _
  $region17: #{rpe_multihead_attention.4} parent=0 // pred_fallthru
    _
  // Predicated region
  $region18: #{rpe_multihead_attention.4} parent=0 // pred_check
    _
  $region19: #{rpe_multihead_attention.4} parent=0 // pred_check_branch
    %136 = sbr.rel (0) target = $region21
  $region20: #{rpe_multihead_attention.4} parent=0 // pred_region
    _
  $region21: #{rpe_multihead_attention.4} parent=0 // pred_fallthru
    _

// kernel: rpe_multihead_attention.7
$region0: #{rpe_multihead_attention.7}
  #allocation0 [shape = 'u32[]', space=smem, size = 0x4, offset = 0x4, fixed_abs, tag = 'smem constant byte address 0x4 - core index']
  #allocation1 [shape = 'u32[144,128]{1,0:T(1,128)}', space=vmem, size = 0x12000, scoped, tag = 'internal scratch']
  %s0 = inlined_call_operand.vmem [shape: f32[2,24,64], index: 0, kind: input, shape index: {}]
  %s1 = inlined_call_operand.vmem [shape: f32[2,24,64], index: 1, kind: input, shape index: {}]
  %s2 = inlined_call_operand.vmem [shape: f32[2,24,64], index: 2, kind: input, shape index: {}]
  %s3 = inlined_call_operand.vmem [shape: f32[2,24,24,64], index: 3, kind: input, shape index: {}]
  %s4 = inlined_call_operand.vmem [shape: bf16[64,64], index: 4, kind: input, shape index: {}]
  %s5 = inlined_call_operand.vmem [shape: f32[1,64], index: 5, kind: input, shape index: {}]
  %s6 = inlined_call_operand.vmem [shape: f32[2,24,64], index: 6, kind: output, shape index: {0}]
  %s7 = inlined_call_operand.vmem [shape: f32[2,4,24,24], index: 7, kind: output, shape index: {1}]
  %8 = xla_tuple %s6, %s7
  %s9 = sld [smem:[#allocation0]]
  $region99: #{rpe_multihead_attention.7} parent=0
    _
  %s11 = ssub.s32 1, %s9
  %s12 = scalar_select 0, %s11, %s9
  $region1: #{rpe_multihead_attention.7} parent=0
    #allocation2 [shape = 'u8[32768]{0}', space=vmem, size = 0x8000, scoped, tag = 'output window, operand 1']
    loop: start=0, step=1, limit=8
    $region2: #{rpe_multihead_attention.7} parent=1 // loop_pre_header
      _
    $region3: #{rpe_multihead_attention.7} parent=1 // loop_header
      %s14 = sphi 0, %s18
      %p15 = scmp.ge.s32.totalorder %s14, 8
      %s21 = sphi 0, %s33
      %s22 = sphi 0, %s29
      %s23 = sphi 0, %s21
      %s24 = sphi 0, %s22
      %s25 = sphi 0, %s23
      %s26 = sphi 0, %s24
      %s38 = sphi 0, %s40
      %s41 = sphi 0, %s38
      %s42 = sphi 0, %s41
      %s58 = sphi 0, %s42
      %s64 = sphi 0, %s66
      %s67 = sphi 0, %s64
      %s68 = sphi 0, %s67
      %s84 = sphi 0, %s68
      %s90 = sphi 0, %s92
      %s93 = sphi 0, %s90
      %s94 = sphi 0, %s93
      %s110 = sphi 0, %s94
      %s118 = sphi 0, %s120
      %s121 = sphi 0, %s118
      %s122 = sphi 0, %s121
      %s138 = sphi 0, %s122
      %s142 = sphi 0, %s142
      %s144 = sphi 0, %s142
      %s145 = sphi 0, %s144
      %s159 = sphi 0, %s145
      %s163 = sphi 0, %s163
      %s165 = sphi 0, %s163
      %s166 = sphi 0, %s165
      %s180 = sphi 0, %s166
      %s188 = sphi 0, %s190
      %s191 = sphi 0, %s188
      %s192 = sphi 0, %s191
      %s208 = sphi 0, %s192
      %s216 = sphi 0, %s218
      %s219 = sphi 0, %s216
      %s220 = sphi 0, %s219
      %s236 = sphi 0, %s220
    $region4: #{rpe_multihead_attention.7} parent=1 // loop_header_branch
      %17 = sbr.rel (%p15) target = $region8
    $region5: #{rpe_multihead_attention.7} parent=1 // loop_body
      %s19 = ssub.s32 %s14, 1
      %s20 = ssub.s32 %s14, 2
      %s27 = sadd.s32 1, %s22
      %p28 = scmp.ge.s32.totalorder %s27, 3
      %s29 = scalar_select %p28, 0, %s27
      %s30 = sadd.s32 1, %s21
      %s31 = scalar_select %p28, %s30, %s21
      %p32 = scmp.ge.s32.totalorder %s31, 2
      %s33 = scalar_select %p32, 0, %s31
      %s34 = ssub.s32 %s21, %s33
      %s35 = ssub.s32 %s22, %s29
      %s36 = sor.u32 %s34, %s35
      %p37 = scmp.eq.s32.totalorder %s36, 0
      %s39 = sadd.s32 %s38, 1
      %s40 = scalar_select %p37, %s38, %s39
      %p43 = pneg %p37
      %p44 = scmp.eq.s32.totalorder %s14, 5
      %p45 = por %p43, %p44
      %p46 = scmp.ne.s32.totalorder %s38, %s41
      %p47 = scmp.eq.s32.totalorder %s14, 0
      %p48 = por %p46, %p47
      %p49 = scmp.ne.s32.totalorder %s38, %s41
      %p50 = scmp.eq.s32.totalorder %s19, 5
      %p51 = por %p49, %p50
      %p52 = scmp.ne.s32.totalorder %s41, %s42
      %p53 = scmp.eq.s32.totalorder %s19, 0
      %p54 = por %p52, %p53
      %p55 = scmp.ne.s32.totalorder %s41, %s42
      %p56 = scmp.eq.s32.totalorder %s20, 5
      %p57 = por %p55, %p56
      %p59 = scmp.ne.s32.totalorder %s42, %s58
      %p60 = scmp.eq.s32.totalorder %s20, 0
      %p61 = por %p59, %p60
      %s62 = ssub.s32 %s21, %s33
      %p63 = scmp.eq.s32.totalorder %s62, 0
      %s65 = sadd.s32 %s64, 1
      %s66 = scalar_select %p63, %s64, %s65
      %p69 = pneg %p63
      %p70 = scmp.eq.s32.totalorder %s14, 5
      %p71 = por %p69, %p70
      %p72 = scmp.ne.s32.totalorder %s64, %s67
      %p73 = scmp.eq.s32.totalorder %s14, 0
      %p74 = por %p72, %p73
      %p75 = scmp.ne.s32.totalorder %s64, %s67
      %p76 = scmp.eq.s32.totalorder %s19, 5
      %p77 = por %p75, %p76
      %p78 = scmp.ne.s32.totalorder %s67, %s68
      %p79 = scmp.eq.s32.totalorder %s19, 0
      %p80 = por %p78, %p79
      %p81 = scmp.ne.s32.totalorder %s67, %s68
      %p82 = scmp.eq.s32.totalorder %s20, 5
      %p83 = por %p81, %p82
      %p85 = scmp.ne.s32.totalorder %s68, %s84
      %p86 = scmp.eq.s32.totalorder %s20, 0
      %p87 = por %p85, %p86
      %s88 = ssub.s32 %s21, %s33
      %p89 = scmp.eq.s32.totalorder %s88, 0
      %s91 = sadd.s32 %s90, 1
      %s92 = scalar_select %p89, %s90, %s91
      %p95 = pneg %p89
      %p96 = scmp.eq.s32.totalorder %s14, 5
      %p97 = por %p95, %p96
      %p98 = scmp.ne.s32.totalorder %s90, %s93
      %p99 = scmp.eq.s32.totalorder %s14, 0
      %p100 = por %p98, %p99
      %p101 = scmp.ne.s32.totalorder %s90, %s93
      %p102 = scmp.eq.s32.totalorder %s19, 5
      %p103 = por %p101, %p102
      %p104 = scmp.ne.s32.totalorder %s93, %s94
      %p105 = scmp.eq.s32.totalorder %s19, 0
      %p106 = por %p104, %p105
      %p107 = scmp.ne.s32.totalorder %s93, %s94
      %p108 = scmp.eq.s32.totalorder %s20, 5
      %p109 = por %p107, %p108
      %p111 = scmp.ne.s32.totalorder %s94, %s110
      %p112 = scmp.eq.s32.totalorder %s20, 0
      %p113 = por %p111, %p112
      %s114 = ssub.s32 %s21, %s33
      %s115 = ssub.s32 %s22, %s29
      %s116 = sor.u32 %s114, %s115
      %p117 = scmp.eq.s32.totalorder %s116, 0
      %s119 = sadd.s32 %s118, 1
      %s120 = scalar_select %p117, %s118, %s119
      %p123 = pneg %p117
      %p124 = scmp.eq.s32.totalorder %s14, 5
      %p125 = por %p123, %p124
      %p126 = scmp.ne.s32.totalorder %s118, %s121
      %p127 = scmp.eq.s32.totalorder %s14, 0
      %p128 = por %p126, %p127
      %p129 = scmp.ne.s32.totalorder %s118, %s121
      %p130 = scmp.eq.s32.totalorder %s19, 5
      %p131 = por %p129, %p130
      %p132 = scmp.ne.s32.totalorder %s121, %s122
      %p133 = scmp.eq.s32.totalorder %s19, 0
      %p134 = por %p132, %p133
      %p135 = scmp.ne.s32.totalorder %s121, %s122
      %p136 = scmp.eq.s32.totalorder %s20, 5
      %p137 = por %p135, %p136
      %p139 = scmp.ne.s32.totalorder %s122, %s138
      %p140 = scmp.eq.s32.totalorder %s20, 0
      %p141 = por %p139, %p140
      %s143 = sadd.s32 %s142, 1
      %p146 = scmp.eq.s32.totalorder %s14, 5
      %p147 = scmp.ne.s32.totalorder %s142, %s144
      %p148 = scmp.eq.s32.totalorder %s14, 0
      %p149 = por %p147, %p148
      %p150 = scmp.ne.s32.totalorder %s142, %s144
      %p151 = scmp.eq.s32.totalorder %s19, 5
      %p152 = por %p150, %p151
      %p153 = scmp.ne.s32.totalorder %s144, %s145
      %p154 = scmp.eq.s32.totalorder %s19, 0
      %p155 = por %p153, %p154
      %p156 = scmp.ne.s32.totalorder %s144, %s145
      %p157 = scmp.eq.s32.totalorder %s20, 5
      %p158 = por %p156, %p157
      %p160 = scmp.ne.s32.totalorder %s145, %s159
      %p161 = scmp.eq.s32.totalorder %s20, 0
      %p162 = por %p160, %p161
      %s164 = sadd.s32 %s163, 1
      %p167 = scmp.eq.s32.totalorder %s14, 5
      %p168 = scmp.ne.s32.totalorder %s163, %s165
      %p169 = scmp.eq.s32.totalorder %s14, 0
      %p170 = por %p168, %p169
      %p171 = scmp.ne.s32.totalorder %s163, %s165
      %p172 = scmp.eq.s32.totalorder %s19, 5
      %p173 = por %p171, %p172
      %p174 = scmp.ne.s32.totalorder %s165, %s166
      %p175 = scmp.eq.s32.totalorder %s19, 0
      %p176 = por %p174, %p175
      %p177 = scmp.ne.s32.totalorder %s165, %s166
      %p178 = scmp.eq.s32.totalorder %s20, 5
      %p179 = por %p177, %p178
      %p181 = scmp.ne.s32.totalorder %s166, %s180
      %p182 = scmp.eq.s32.totalorder %s20, 0
      %p183 = por %p181, %p182
      %s184 = ssub.s32 %s21, %s33
      %s185 = ssub.s32 %s22, %s29
      %s186 = sor.u32 %s184, %s185
      %p187 = scmp.eq.s32.totalorder %s186, 0
      %s189 = sadd.s32 %s188, 1
      %s190 = scalar_select %p187, %s188, %s189
      %p193 = pneg %p187
      %p194 = scmp.eq.s32.totalorder %s14, 5
      %p195 = por %p193, %p194
      %p196 = scmp.ne.s32.totalorder %s188, %s191
      %p197 = scmp.eq.s32.totalorder %s14, 0
      %p198 = por %p196, %p197
      %p199 = scmp.ne.s32.totalorder %s188, %s191
      %p200 = scmp.eq.s32.totalorder %s19, 5
      %p201 = por %p199, %p200
      %p202 = scmp.ne.s32.totalorder %s191, %s192
      %p203 = scmp.eq.s32.totalorder %s19, 0
      %p204 = por %p202, %p203
      %p205 = scmp.ne.s32.totalorder %s191, %s192
      %p206 = scmp.eq.s32.totalorder %s20, 5
      %p207 = por %p205, %p206
      %p209 = scmp.ne.s32.totalorder %s192, %s208
      %p210 = scmp.eq.s32.totalorder %s20, 0
      %p211 = por %p209, %p210
      %s212 = ssub.s32 %s21, %s33
      %s213 = ssub.s32 %s22, %s29
      %s214 = sor.u32 %s212, %s213
      %p215 = scmp.eq.s32.totalorder %s214, 0
      %s217 = sadd.s32 %s216, 1
      %s218 = scalar_select %p215, %s216, %s217
      %p221 = pneg %p215
      %p222 = scmp.eq.s32.totalorder %s14, 5
      %p223 = por %p221, %p222
      %p224 = scmp.ne.s32.totalorder %s216, %s219
      %p225 = scmp.eq.s32.totalorder %s14, 0
      %p226 = por %p224, %p225
      %p227 = scmp.ne.s32.totalorder %s216, %s219
      %p228 = scmp.eq.s32.totalorder %s19, 5
      %p229 = por %p227, %p228
      %p230 = scmp.ne.s32.totalorder %s219, %s220
      %p231 = scmp.eq.s32.totalorder %s19, 0
      %p232 = por %p230, %p231
      %p233 = scmp.ne.s32.totalorder %s219, %s220
      %p234 = scmp.eq.s32.totalorder %s20, 5
      %p235 = por %p233, %p234
      %p237 = scmp.ne.s32.totalorder %s220, %s236
      %p238 = scmp.eq.s32.totalorder %s20, 0
      %p239 = por %p237, %p238
      %p240 = scmp.le.s32.totalorder 1, %s14
      %p241 = scmp.lt.s32.totalorder %s14, 7
      %p242 = pnand %p240, %p241
      %p243 = pneg %p242
      // Predicated region
      $region9: #{rpe_multihead_attention.7} parent=5 // pred_check
        _
      $region10: #{rpe_multihead_attention.7} parent=5 // pred_check_branch
        %245 = sbr.rel (%p242) target = $region12
      $region11: #{rpe_multihead_attention.7} parent=5 // pred_region
        %s246 = ssub.s32 %s14, 1
        // Predicated region
        $region13: #{rpe_multihead_attention.7} parent=11 // pred_check
          %p247 = pneg %p155
        $region14: #{rpe_multihead_attention.7} parent=11 // pred_check_branch
          %249 = sbr.rel (%p247) target = $region16
        $region15: #{rpe_multihead_attention.7} parent=11 // pred_region
          _
        $region16: #{rpe_multihead_attention.7} parent=11 // pred_fallthru
          _
        // Predicated region
        $region17: #{rpe_multihead_attention.7} parent=11 // pred_check
          %p250 = pneg %p176
        $region18: #{rpe_multihead_attention.7} parent=11 // pred_check_branch
          %252 = sbr.rel (%p250) target = $region20
        $region19: #{rpe_multihead_attention.7} parent=11 // pred_region
          _
        $region20: #{rpe_multihead_attention.7} parent=11 // pred_fallthru
          _
      $region12: #{rpe_multihead_attention.7} parent=5 // pred_fallthru
        _
      %p253 = scmp.lt.s32.totalorder %s14, 6
      // Predicated region
      $region21: #{rpe_multihead_attention.7} parent=5 // pred_check
        %p254 = pneg %p253
      $region22: #{rpe_multihead_attention.7} parent=5 // pred_check_branch
        %256 = sbr.rel (%p254) target = $region24
      $region23: #{rpe_multihead_attention.7} parent=5 // pred_region
        // Predicated region
        $region25: #{rpe_multihead_attention.7} parent=23 // pred_check
          %p257 = pneg %p48
        $region26: #{rpe_multihead_attention.7} parent=23 // pred_check_branch
          %259 = sbr.rel (%p257) target = $region28
        $region27: #{rpe_multihead_attention.7} parent=23 // pred_region
          %p260 = scmp.lt.s32.totalorder %s21, 1
          %s261 = scalar_select %p260, %s21, 1
          %p262 = scmp.lt.s32.totalorder %s22, 2
          %s263 = scalar_select %p262, %s22, 2
          %s264 = smul.addr %s261, 3
          %s265 = sadd.s32 %s263, %s264
          %s266 = smul.addr %s265, 8
          %s267 = scalar_lea.vmem %s0, %s266
        $region28: #{rpe_multihead_attention.7} parent=23 // pred_fallthru
          _
        // Predicated region
        $region29: #{rpe_multihead_attention.7} parent=23 // pred_check
          %p268 = pneg %p74
        $region30: #{rpe_multihead_attention.7} parent=23 // pred_check_branch
          %270 = sbr.rel (%p268) target = $region32
        $region31: #{rpe_multihead_attention.7} parent=23 // pred_region
          %p271 = scmp.lt.s32.totalorder %s21, 1
          %s272 = scalar_select %p271, %s21, 1
          %s273 = smul.addr %s272, 3
          %s274 = smul.addr %s273, 8
          %s275 = scalar_lea.vmem %s1, %s274
        $region32: #{rpe_multihead_attention.7} parent=23 // pred_fallthru
          _
        // Predicated region
        $region33: #{rpe_multihead_attention.7} parent=23 // pred_check
          %p276 = pneg %p100
        $region34: #{rpe_multihead_attention.7} parent=23 // pred_check_branch
          %278 = sbr.rel (%p276) target = $region36
        $region35: #{rpe_multihead_attention.7} parent=23 // pred_region
          %p279 = scmp.lt.s32.totalorder %s21, 1
          %s280 = scalar_select %p279, %s21, 1
          %s281 = smul.addr %s280, 3
          %s282 = smul.addr %s281, 8
          %s283 = scalar_lea.vmem %s2, %s282
        $region36: #{rpe_multihead_attention.7} parent=23 // pred_fallthru
          _
        // Predicated region
        $region37: #{rpe_multihead_attention.7} parent=23 // pred_check
          %p284 = pneg %p128
        $region38: #{rpe_multihead_attention.7} parent=23 // pred_check_branch
          %286 = sbr.rel (%p284) target = $region40
        $region39: #{rpe_multihead_attention.7} parent=23 // pred_region
          %s287 = smul.u32 8, %s22
          %p288 = scmp.lt.s32.totalorder %s21, 1
          %s289 = scalar_select %p288, %s21, 1
          %p290 = scmp.lt.s32.totalorder %s287, 23
          %s291 = scalar_select %p290, %s287, 23
          %s292 = smul.addr %s291, 3
          %s293 = smul.addr %s289, 72
          %s294 = sadd.s32 %s292, %s293
          %s295 = smul.addr %s294, 8
          %s296 = scalar_lea.vmem %s3, %s295
          %s297 = smul.u32 8, %s22
        $region40: #{rpe_multihead_attention.7} parent=23 // pred_fallthru
          _
      $region24: #{rpe_multihead_attention.7} parent=5 // pred_fallthru
        _
      %p298 = scmp.le.s32.totalorder 1, %s14
      %p299 = scmp.lt.s32.totalorder %s14, 7
      %p300 = pnand %p298, %p299
      %p301 = pneg %p300
      // Predicated region
      $region41: #{rpe_multihead_attention.7} parent=5 // pred_check
        _
      $region42: #{rpe_multihead_attention.7} parent=5 // pred_check_branch
        %303 = sbr.rel (%p300) target = $region44
      $region43: #{rpe_multihead_attention.7} parent=5 // pred_region
        %s304 = ssub.s32 %s14, 1
        %p305 = scmp.lt.s32.totalorder %s23, 1
        %s306 = scalar_select %p305, %s23, 1
        %p307 = scmp.lt.s32.totalorder %s24, 2
        %s308 = scalar_select %p307, %s24, 2
        %s309 = smul.addr %s306, 3
        %s310 = sadd.s32 %s308, %s309
        %s311 = smul.addr %s310, 8
        %s312 = scalar_lea.vmem %s0, %s311
        %p313 = pneg %p54
        %p314 = pneg %p51
        %p315 = scmp.lt.s32.totalorder %s23, 1
        %s316 = scalar_select %p315, %s23, 1
        %s317 = smul.addr %s316, 3
        %s318 = smul.addr %s317, 8
        %s319 = scalar_lea.vmem %s1, %s318
        %p320 = pneg %p80
        %p321 = pneg %p77
        %p322 = scmp.lt.s32.totalorder %s23, 1
        %s323 = scalar_select %p322, %s23, 1
        %s324 = smul.addr %s323, 3
        %s325 = smul.addr %s324, 8
        %s326 = scalar_lea.vmem %s2, %s325
        %p327 = pneg %p106
        %p328 = pneg %p103
        %s329 = smul.u32 8, %s24
        %p330 = scmp.lt.s32.totalorder %s23, 1
        %s331 = scalar_select %p330, %s23, 1
        %p332 = scmp.lt.s32.totalorder %s329, 23
        %s333 = scalar_select %p332, %s329, 23
        %s334 = smul.addr %s333, 3
        %s335 = smul.addr %s331, 72
        %s336 = sadd.s32 %s334, %s335
        %s337 = smul.addr %s336, 8
        %s338 = scalar_lea.vmem %s3, %s337
        %p339 = pneg %p134
        %p340 = pneg %p131
        %p341 = pneg %p155
        %p342 = pneg %p152
        %p343 = pneg %p176
        %p344 = pneg %p173
        %p345 = pneg %p204
        %p346 = pneg %p201
        %p347 = scmp.lt.s32.totalorder %s23, 1
        %s348 = scalar_select %p347, %s23, 1
        %p349 = scmp.lt.s32.totalorder %s24, 2
        %s350 = scalar_select %p349, %s24, 2
        %s351 = smul.addr %s348, 3
        %s352 = sadd.s32 %s350, %s351
        %s353 = smul.addr %s352, 8
        %s354 = scalar_lea.vmem %s6, %s353
        %p355 = pneg %p232
        %p356 = pneg %p229
        %s357 = sand.u32 %s219, 1
        %s358 = sand.u32 %s219, 1
        %s359 = smul.addr %s358, 32
        %s360 = scalar_lea.vmem [#allocation2], %s359
        %p361 = scmp.lt.s32.totalorder %s23, 1
        %s362 = scalar_select %p361, %s23, 1
        %p363 = scmp.lt.s32.totalorder %s24, 2
        %s364 = scalar_select %p363, %s24, 2
        %s365 = smul.addr %s362, 3
        %s366 = sadd.s32 %s364, %s365
        %s367 = smul.addr %s366, 8
        %s368 = scalar_lea.vmem %s0, %s367
        %p369 = scmp.lt.s32.totalorder %s23, 1
        %s370 = scalar_select %p369, %s23, 1
        %s371 = smul.addr %s370, 3
        %s372 = smul.addr %s371, 8
        %s373 = scalar_lea.vmem %s1, %s372
        %p374 = scmp.lt.s32.totalorder %s23, 1
        %s375 = scalar_select %p374, %s23, 1
        %s376 = smul.addr %s375, 3
        %s377 = smul.addr %s376, 8
        %s378 = scalar_lea.vmem %s2, %s377
        %s379 = smul.u32 8, %s24
        %p380 = scmp.lt.s32.totalorder %s23, 1
        %s381 = scalar_select %p380, %s23, 1
        %p382 = scmp.lt.s32.totalorder %s379, 23
        %s383 = scalar_select %p382, %s379, 23
        %s384 = smul.addr %s383, 3
        %s385 = smul.addr %s381, 72
        %s386 = sadd.s32 %s384, %s385
        %s387 = smul.addr %s386, 8
        %s388 = scalar_lea.vmem %s3, %s387
        %s389 = smul.u32 8, %s24
        %p390 = scmp.lt.s32.totalorder %s23, 1
        %s391 = scalar_select %p390, %s23, 1
        %p392 = scmp.lt.s32.totalorder %s24, 2
        %s393 = scalar_select %p392, %s24, 2
        %s394 = smul.addr %s391, 3
        %s395 = sadd.s32 %s393, %s394
        %s396 = smul.addr %s395, 8
        %s397 = scalar_lea.vmem %s6, %s396
        %v399 = vld [vmem:[%s368] sm:$0xff]
        %v400 = vpack.c.bf16 %v399, %v399
        %v401 = vld [vmem:[%s373] sm:$0xff]
        %v402 = vld [vmem:[%s373 + $0x8] sm:$0xff]
        %v403 = vld [vmem:[%s373 + $0x10] sm:$0xff]
        %v404 = vpack.c.bf16 %v402, %v401
        %v405 = vpack.c.bf16 %v403, %v403
        %v406 = vld [vmem:[%s378] sm:$0xff]
        %v407 = vld [vmem:[%s378 + $0x8] sm:$0xff]
        %v408 = vld [vmem:[%s378 + $0x10] sm:$0xff]
        %v409 = vpack.c.bf16 %v407, %v406
        %v410 = vpack.c.bf16 %v408, %v408
        %v411 = vld [vmem:[%s388] sm:$0xff]
        %v412 = vld [vmem:[%s388 + $0x8] sm:$0xff]
        %v413 = vld [vmem:[%s388 + $0x10] sm:$0xff]
        %v414 = vld [vmem:[%s388 + $0x18] sm:$0xff]
        %v415 = vld [vmem:[%s388 + $0x20] sm:$0xff]
        %v416 = vld [vmem:[%s388 + $0x28] sm:$0xff]
        %v417 = vld [vmem:[%s388 + $0x30] sm:$0xff]
        %v418 = vld [vmem:[%s388 + $0x38] sm:$0xff]
        %v419 = vld [vmem:[%s388 + $0x40] sm:$0xff]
        %v420 = vld [vmem:[%s388 + $0x48] sm:$0xff]
        %v421 = vld [vmem:[%s388 + $0x50] sm:$0xff]
        %v422 = vld [vmem:[%s388 + $0x58] sm:$0xff]
        %v423 = vld [vmem:[%s388 + $0x60] sm:$0xff]
        %v424 = vld [vmem:[%s388 + $0x68] sm:$0xff]
        %v425 = vld [vmem:[%s388 + $0x70] sm:$0xff]
        %v426 = vld [vmem:[%s388 + $0x78] sm:$0xff]
        %v427 = vld [vmem:[%s388 + $0x80] sm:$0xff]
        %v428 = vld [vmem:[%s388 + $0x88] sm:$0xff]
        %v429 = vld [vmem:[%s388 + $0x90] sm:$0xff]
        %v430 = vld [vmem:[%s388 + $0x98] sm:$0xff]
        %v431 = vld [vmem:[%s388 + $0xa0] sm:$0xff]
        %v432 = vld [vmem:[%s388 + $0xa8] sm:$0xff]
        %v433 = vld [vmem:[%s388 + $0xb0] sm:$0xff]
        %v434 = vld [vmem:[%s388 + $0xb8] sm:$0xff]
        %v435 = vpack.c.bf16 %v412, %v411
        %v436 = vpack.c.bf16 %v414, %v413
        %v437 = vpack.c.bf16 %v416, %v415
        %v438 = vpack.c.bf16 %v418, %v417
        %v439 = vpack.c.bf16 %v420, %v419
        %v440 = vpack.c.bf16 %v422, %v421
        %v441 = vpack.c.bf16 %v424, %v423
        %v442 = vpack.c.bf16 %v426, %v425
        %v443 = vpack.c.bf16 %v428, %v427
        %v444 = vpack.c.bf16 %v430, %v429
        %v445 = vpack.c.bf16 %v432, %v431
        %v446 = vpack.c.bf16 %v434, %v433
        %v447 = vld [vmem:[%s4] sm:$0xf]
        %v448 = vld [vmem:[%s4 + $0x4] sm:$0xf]
        %v449 = vld [vmem:[%s4 + $0x8] sm:$0xf]
        %v450 = vld [vmem:[%s4 + $0xc] sm:$0xf]
        %v451 = vld [vmem:[%s4 + $0x10] sm:$0xf]
        %v452 = vld [vmem:[%s4 + $0x14] sm:$0xf]
        %v453 = vld [vmem:[%s4 + $0x18] sm:$0xf]
        %v454 = vld [vmem:[%s4 + $0x1c] sm:$0xf]
        %v455 = vld [vmem:[%s5] sm:$0x1]
        %v457 = vlaneseq
        %v458 = vshrl.u32 %v457, 7
        %v459 = vsub.s32 0, %v458
        %v460 = vrot.slane %v455, %v459
        %v470 = vunpack.c.l.b16 %v447
        %v471 = vunpack.c.l.b16 %v448
        %v472 = vunpack.c.l.b16 %v449
        %v473 = vunpack.c.l.b16 %v450
        %v474 = vunpack.c.l.b16 %v451
        %v475 = vunpack.c.l.b16 %v452
        %v476 = vunpack.c.l.b16 %v453
        %v477 = vunpack.c.l.b16 %v454
        %v478 = vpack.c.b16 %v471, %v470
        %v479 = vpack.c.b16 %v473, %v472
        %v480 = vpack.c.b16 %v475, %v474
        %v481 = vpack.c.b16 %v477, %v476
        %vm486 = vcmask 523264
        %v488 = vsel %vm486, %v435, 0
        %v491 = vsel %vm486, %v436, 0
        %v494 = vsel %vm486, %v437, 0
        %v497 = vsel %vm486, %v438, 0
        %v500 = vsel %vm486, %v439, 0
        %v503 = vsel %vm486, %v440, 0
        %v506 = vsel %vm486, %v441, 0
        %v509 = vsel %vm486, %v442, 0
        %v512 = vsel %vm486, %v443, 0
        %v515 = vsel %vm486, %v444, 0
        %v518 = vsel %vm486, %v445, 0
        %v521 = vsel %vm486, %v446, 0
        %523 = vmatprep.subr.bf16.mxu0 0
        %524 = vmatpush1.bf16.msra.mxu0 0
        %525 = vmatprep.subr.bf16.mxu0 0
        %526 = vmatpush1.bf16.msra.mxu0 0
        %527 = vmatprep.subr.bf16.mxu0 0
        %528 = vmatpush1.bf16.msra.mxu0 0
        %529 = vmatprep.subr.bf16.mxu0 0
        %530 = vmatpush1.bf16.msra.mxu0 0
        %531 = vmatprep.subr.bf16.mxu0 0
        %532 = vmatpush1.bf16.msra.mxu0 %v481
        %533 = vmatprep.subr.bf16.mxu0 0
        %534 = vmatpush1.bf16.msra.mxu0 %v480
        %535 = vmatprep.subr.bf16.mxu0 0
        %536 = vmatpush1.bf16.msra.mxu0 %v479
        %537 = vmatprep.subr.bf16.mxu0 0
        %538 = vmatpush1.bf16.msra.mxu0 %v478
        %539 = vmatprep.subr.bf16.mxu0 0
        %540 = vmatpush2.bf16.msra.mxu0 0
        %541 = vmatprep.subr.bf16.mxu0 0
        %542 = vmatpush2.bf16.msra.mxu0 0
        %543 = vmatprep.subr.bf16.mxu0 0
        %544 = vmatpush2.bf16.msra.mxu0 0
        %545 = vmatprep.subr.bf16.mxu0 0
        %546 = vmatpush2.bf16.msra.mxu0 0
        %547 = vmatprep.subr.bf16.mxu0 0
        %548 = vmatpush2.bf16.msra.mxu0 0
        %549 = vmatprep.subr.bf16.mxu0 0
        %550 = vmatpush2.bf16.msra.mxu0 0
        %551 = vmatprep.subr.bf16.mxu0 0
        %552 = vmatpush2.bf16.msra.mxu0 0
        %553 = vmatprep.subr.bf16.mxu0 0
        %554 = vmatpush2.bf16.msra.mxu0 0
        %555 = vmatprep.mubr.bf16.mxu0 0
        %556 = vmatmul.mubr.bf16.gmra.mxu0 %v488
        %v557 = vpop.f32.mrf.mxu0
        %v558 = vadd.f32 %v460, %v557
        %v559 = vpop.f32.mrf.mxu0
        %v560 = vpop.f32.mrf.mxu0
        %v561 = vadd.f32 %v460, %v560
        %v562 = vpop.f32.mrf.mxu0
        %563 = vmatprep.mubr.bf16.mxu0 0
        %564 = vmatmul.mubr.bf16.gmra.mxu0 %v491
        %v565 = vpop.f32.mrf.mxu0
        %v566 = vadd.f32 %v460, %v565
        %v567 = vpop.f32.mrf.mxu0
        %v568 = vpop.f32.mrf.mxu0
        %v569 = vadd.f32 %v460, %v568
        %v570 = vpop.f32.mrf.mxu0
        %571 = vmatprep.mubr.bf16.mxu0 0
        %572 = vmatmul.mubr.bf16.gmra.mxu0 %v494
        %v573 = vpop.f32.mrf.mxu0
        %v574 = vadd.f32 %v460, %v573
        %v575 = vpop.f32.mrf.mxu0
        %v576 = vpop.f32.mrf.mxu0
        %v577 = vadd.f32 %v460, %v576
        %v578 = vpop.f32.mrf.mxu0
        %579 = vmatprep.mubr.bf16.mxu0 0
        %580 = vmatmul.mubr.bf16.gmra.mxu0 %v497
        %v581 = vpop.f32.mrf.mxu0
        %v582 = vadd.f32 %v460, %v581
        %v583 = vpop.f32.mrf.mxu0
        %v584 = vpop.f32.mrf.mxu0
        %v585 = vadd.f32 %v460, %v584
        %v586 = vpop.f32.mrf.mxu0
        %587 = vmatprep.mubr.bf16.mxu0 0
        %588 = vmatmul.mubr.bf16.gmra.mxu0 %v500
        %v589 = vpop.f32.mrf.mxu0
        %v590 = vadd.f32 %v460, %v589
        %v591 = vpop.f32.mrf.mxu0
        %v592 = vpop.f32.mrf.mxu0
        %v593 = vadd.f32 %v460, %v592
        %v594 = vpop.f32.mrf.mxu0
        %595 = vmatprep.mubr.bf16.mxu0 0
        %596 = vmatmul.mubr.bf16.gmra.mxu0 %v503
        %v597 = vpop.f32.mrf.mxu0
        %v598 = vadd.f32 %v460, %v597
        %v599 = vpop.f32.mrf.mxu0
        %v600 = vpop.f32.mrf.mxu0
        %v601 = vadd.f32 %v460, %v600
        %v602 = vpop.f32.mrf.mxu0
        %603 = vmatprep.mubr.bf16.mxu0 0
        %604 = vmatmul.mubr.bf16.gmra.mxu0 %v506
        %v605 = vpop.f32.mrf.mxu0
        %v606 = vadd.f32 %v460, %v605
        %v607 = vpop.f32.mrf.mxu0
        %v608 = vpop.f32.mrf.mxu0
        %v609 = vadd.f32 %v460, %v608
        %v610 = vpop.f32.mrf.mxu0
        %611 = vmatprep.mubr.bf16.mxu0 0
        %612 = vmatmul.mubr.bf16.gmra.mxu0 %v509
        %v613 = vpop.f32.mrf.mxu0
        %v614 = vadd.f32 %v460, %v613
        %v615 = vpop.f32.mrf.mxu0
        %v616 = vpop.f32.mrf.mxu0
        %v617 = vadd.f32 %v460, %v616
        %v618 = vpop.f32.mrf.mxu0
        %619 = vmatprep.mubr.bf16.mxu0 0
        %620 = vmatmul.mubr.bf16.gmra.mxu0 %v512
        %v621 = vpop.f32.mrf.mxu0
        %v622 = vadd.f32 %v460, %v621
        %v623 = vpop.f32.mrf.mxu0
        %v624 = vpop.f32.mrf.mxu0
        %v625 = vadd.f32 %v460, %v624
        %v626 = vpop.f32.mrf.mxu0
        %627 = vmatprep.mubr.bf16.mxu0 0
        %628 = vmatmul.mubr.bf16.gmra.mxu0 %v515
        %v629 = vpop.f32.mrf.mxu0
        %v630 = vadd.f32 %v460, %v629
        %v631 = vpop.f32.mrf.mxu0
        %v632 = vpop.f32.mrf.mxu0
        %v633 = vadd.f32 %v460, %v632
        %v634 = vpop.f32.mrf.mxu0
        %635 = vmatprep.mubr.bf16.mxu0 0
        %636 = vmatmul.mubr.bf16.gmra.mxu0 %v518
        %v637 = vpop.f32.mrf.mxu0
        %v638 = vadd.f32 %v460, %v637
        %v639 = vpop.f32.mrf.mxu0
        %v640 = vpop.f32.mrf.mxu0
        %v641 = vadd.f32 %v460, %v640
        %v642 = vpop.f32.mrf.mxu0
        %643 = vmatprep.mubr.bf16.mxu0 0
        %644 = vmatmul.mubr.bf16.gmra.mxu0 %v521
        %v645 = vpop.f32.mrf.mxu0
        %v646 = vadd.f32 %v460, %v645
        %v647 = vpop.f32.mrf.mxu0
        %v648 = vpop.f32.mrf.mxu0
        %v649 = vadd.f32 %v460, %v648
        %v650 = vpop.f32.mrf.mxu0
        %651 = vdwg.mxu0
        %v653 = vcombine.high %v399, %v399
        %v655 = vunpack.c.l.s4 1966171168
        %v656 = vunpack.c.0.s8 %v655
        %v657 = vlaneseq
        %v658 = vshrl.u32 %v657, 7
        %v659 = vsub.s32 %v656, %v658
        %v660 = vrot.slane %v399, %v659
        %v662 = vunpack.c.l.s4 1966171168
        %v663 = vunpack.c.0.s8 %v662
        %v664 = vlaneseq
        %v665 = vshrl.u32 %v664, 7
        %v666 = vsub.s32 %v663, %v665
        %v667 = vrot.slane %v653, %v666
        %v668 = vcombine.high %v660, %v660
        %v669 = vcombine.high %v667, %v667
        %v671 = vunpack.c.l.s4 1966171168
        %v672 = vunpack.c.0.s8 %v671
        %v673 = vlaneseq
        %v674 = vshrl.u32 %v673, 7
        %v675 = vsub.s32 %v672, %v674
        %v676 = vrot.slane %v660, %v675
        %v678 = vunpack.c.l.s4 1966171168
        %v679 = vunpack.c.0.s8 %v678
        %v680 = vlaneseq
        %v681 = vshrl.u32 %v680, 7
        %v682 = vsub.s32 %v679, %v681
        %v683 = vrot.slane %v667, %v682
        %v685 = vunpack.c.l.s4 1966171168
        %v686 = vunpack.c.0.s8 %v685
        %v687 = vlaneseq
        %v688 = vshrl.u32 %v687, 7
        %v689 = vsub.s32 %v686, %v688
        %v690 = vrot.slane %v668, %v689
        %v692 = vunpack.c.l.s4 1966171168
        %v693 = vunpack.c.0.s8 %v692
        %v694 = vlaneseq
        %v695 = vshrl.u32 %v694, 7
        %v696 = vsub.s32 %v693, %v695
        %v697 = vrot.slane %v669, %v696
        %v698 = vcombine.high %v676, %v676
        %v699 = vcombine.high %v683, %v683
        %v700 = vcombine.high %v690, %v690
        %v701 = vcombine.high %v697, %v697
        %v702 = vlaneseq
        %v703 = vshrl.u32 %v702, 7
        %v704 = vsub.s32 0, %v703
        %v705 = vrot.slane %v676, %v704
        %v706 = vlaneseq
        %v707 = vshrl.u32 %v706, 7
        %v708 = vsub.s32 0, %v707
        %v709 = vrot.slane %v690, %v708
        %v710 = vlaneseq
        %v711 = vshrl.u32 %v710, 7
        %v712 = vsub.s32 0, %v711
        %v713 = vrot.slane %v698, %v712
        %v714 = vlaneseq
        %v715 = vshrl.u32 %v714, 7
        %v716 = vsub.s32 0, %v715
        %v717 = vrot.slane %v700, %v716
        %v718 = vlaneseq
        %v719 = vshrl.u32 %v718, 7
        %v720 = vsub.s32 0, %v719
        %v721 = vrot.slane %v683, %v720
        %v722 = vlaneseq
        %v723 = vshrl.u32 %v722, 7
        %v724 = vsub.s32 0, %v723
        %v725 = vrot.slane %v697, %v724
        %v726 = vlaneseq
        %v727 = vshrl.u32 %v726, 7
        %v728 = vsub.s32 0, %v727
        %v729 = vrot.slane %v699, %v728
        %v730 = vlaneseq
        %v731 = vshrl.u32 %v730, 7
        %v732 = vsub.s32 0, %v731
        %v733 = vrot.slane %v701, %v732
        %v742 = vmul.f32 %v558, %v705
        %v743 = vmul.f32 %v561, %v705
        %v744 = vmul.f32 %v566, %v705
        %v745 = vmul.f32 %v569, %v709
        %v746 = vmul.f32 %v574, %v709
        %v747 = vmul.f32 %v577, %v709
        %v748 = vmul.f32 %v582, %v713
        %v749 = vmul.f32 %v585, %v713
        %v750 = vmul.f32 %v590, %v713
        %v751 = vmul.f32 %v593, %v717
        %v752 = vmul.f32 %v598, %v717
        %v753 = vmul.f32 %v601, %v717
        %v754 = vmul.f32 %v606, %v721
        %v755 = vmul.f32 %v609, %v721
        %v756 = vmul.f32 %v614, %v721
        %v757 = vmul.f32 %v617, %v725
        %v758 = vmul.f32 %v622, %v725
        %v759 = vmul.f32 %v625, %v725
        %v760 = vmul.f32 %v630, %v729
        %v761 = vmul.f32 %v633, %v729
        %v762 = vmul.f32 %v638, %v729
        %v763 = vmul.f32 %v641, %v733
        %v764 = vmul.f32 %v646, %v733
        %v765 = vmul.f32 %v649, %v733
        %vm766 = vcmask 130048
        %v767 = vsel %vm766, %v742, 0.0
        %768 = vadd.xlane.f32.xlu0 %v767
        %v769 = vpop.xlane.xlu0 %768
        %v770 = vsel %vm766, %v743, 0.0
        %771 = vadd.xlane.f32.xlu0 %v770
        %v772 = vpop.xlane.xlu0 %771
        %v773 = vsel %vm766, %v744, 0.0
        %774 = vadd.xlane.f32.xlu0 %v773
        %v775 = vpop.xlane.xlu0 %774
        %v776 = vsel %vm766, %v745, 0.0
        %777 = vadd.xlane.f32.xlu0 %v776
        %v778 = vpop.xlane.xlu0 %777
        %v779 = vsel %vm766, %v746, 0.0
        %780 = vadd.xlane.f32.xlu0 %v779
        %v781 = vpop.xlane.xlu0 %780
        %v782 = vsel %vm766, %v747, 0.0
        %783 = vadd.xlane.f32.xlu0 %v782
        %v784 = vpop.xlane.xlu0 %783
        %v785 = vsel %vm766, %v748, 0.0
        %786 = vadd.xlane.f32.xlu0 %v785
        %v787 = vpop.xlane.xlu0 %786
        %v788 = vsel %vm766, %v749, 0.0
        %789 = vadd.xlane.f32.xlu0 %v788
        %v790 = vpop.xlane.xlu0 %789
        %v791 = vsel %vm766, %v750, 0.0
        %792 = vadd.xlane.f32.xlu0 %v791
        %v793 = vpop.xlane.xlu0 %792
        %v794 = vsel %vm766, %v751, 0.0
        %795 = vadd.xlane.f32.xlu0 %v794
        %v796 = vpop.xlane.xlu0 %795
        %v797 = vsel %vm766, %v752, 0.0
        %798 = vadd.xlane.f32.xlu0 %v797
        %v799 = vpop.xlane.xlu0 %798
        %v800 = vsel %vm766, %v753, 0.0
        %801 = vadd.xlane.f32.xlu0 %v800
        %v802 = vpop.xlane.xlu0 %801
        %v803 = vsel %vm766, %v754, 0.0
        %804 = vadd.xlane.f32.xlu0 %v803
        %v805 = vpop.xlane.xlu0 %804
        %v806 = vsel %vm766, %v755, 0.0
        %807 = vadd.xlane.f32.xlu0 %v806
        %v808 = vpop.xlane.xlu0 %807
        %v809 = vsel %vm766, %v756, 0.0
        %810 = vadd.xlane.f32.xlu0 %v809
        %v811 = vpop.xlane.xlu0 %810
        %v812 = vsel %vm766, %v757, 0.0
        %813 = vadd.xlane.f32.xlu0 %v812
        %v814 = vpop.xlane.xlu0 %813
        %v815 = vsel %vm766, %v758, 0.0
        %816 = vadd.xlane.f32.xlu0 %v815
        %v817 = vpop.xlane.xlu0 %816
        %v818 = vsel %vm766, %v759, 0.0
        %819 = vadd.xlane.f32.xlu0 %v818
        %v820 = vpop.xlane.xlu0 %819
        %v821 = vsel %vm766, %v760, 0.0
        %822 = vadd.xlane.f32.xlu0 %v821
        %v823 = vpop.xlane.xlu0 %822
        %v824 = vsel %vm766, %v761, 0.0
        %825 = vadd.xlane.f32.xlu0 %v824
        %v826 = vpop.xlane.xlu0 %825
        %v827 = vsel %vm766, %v762, 0.0
        %828 = vadd.xlane.f32.xlu0 %v827
        %v829 = vpop.xlane.xlu0 %828
        %v830 = vsel %vm766, %v763, 0.0
        %831 = vadd.xlane.f32.xlu0 %v830
        %v832 = vpop.xlane.xlu0 %831
        %v833 = vsel %vm766, %v764, 0.0
        %834 = vadd.xlane.f32.xlu0 %v833
        %v835 = vpop.xlane.xlu0 %834
        %v836 = vsel %vm766, %v765, 0.0
        %837 = vadd.xlane.f32.xlu0 %v836
        %v838 = vpop.xlane.xlu0 %837
        %v863 = vlaneseq
        %v864 = vand.u32 %v863, 127
        %v865 = vlaneseq
        %v866 = vshrl.u32 %v865, 7
        %v867 = vsub.s32 %v864, %v866
        %v868 = vrot.slane %v769, %v867
        %v869 = vadd.s32 %v864, 4294967288
        %v870 = vlaneseq
        %v871 = vshrl.u32 %v870, 7
        %v872 = vsub.s32 %v869, %v871
        %v873 = vrot.slane %v772, %v872
        %vm874 = vcmask 130112
        %v875 = vsel %vm874, %v873, %v868
        %v876 = vadd.s32 %v864, 4294967280
        %v877 = vlaneseq
        %v878 = vshrl.u32 %v877, 7
        %v879 = vsub.s32 %v876, %v878
        %v880 = vrot.slane %v775, %v879
        %vm881 = vcmask 195712
        %v882 = vsel %vm881, %v880, %v875
        %v883 = vlaneseq
        %v884 = vshrl.u32 %v883, 7
        %v885 = vsub.s32 %v864, %v884
        %v886 = vrot.slane %v778, %v885
        %v887 = vlaneseq
        %v888 = vshrl.u32 %v887, 7
        %v889 = vsub.s32 %v869, %v888
        %v890 = vrot.slane %v781, %v889
        %v891 = vsel %vm874, %v890, %v886
        %v892 = vlaneseq
        %v893 = vshrl.u32 %v892, 7
        %v894 = vsub.s32 %v876, %v893
        %v895 = vrot.slane %v784, %v894
        %v896 = vsel %vm881, %v895, %v891
        %v897 = vlaneseq
        %v898 = vshrl.u32 %v897, 7
        %v899 = vsub.s32 %v864, %v898
        %v900 = vrot.slane %v787, %v899
        %v901 = vlaneseq
        %v902 = vshrl.u32 %v901, 7
        %v903 = vsub.s32 %v869, %v902
        %v904 = vrot.slane %v790, %v903
        %v905 = vsel %vm874, %v904, %v900
        %v906 = vlaneseq
        %v907 = vshrl.u32 %v906, 7
        %v908 = vsub.s32 %v876, %v907
        %v909 = vrot.slane %v793, %v908
        %v910 = vsel %vm881, %v909, %v905
        %v911 = vlaneseq
        %v912 = vshrl.u32 %v911, 7
        %v913 = vsub.s32 %v864, %v912
        %v914 = vrot.slane %v796, %v913
        %v915 = vlaneseq
        %v916 = vshrl.u32 %v915, 7
        %v917 = vsub.s32 %v869, %v916
        %v918 = vrot.slane %v799, %v917
        %v919 = vsel %vm874, %v918, %v914
        %v920 = vlaneseq
        %v921 = vshrl.u32 %v920, 7
        %v922 = vsub.s32 %v876, %v921
        %v923 = vrot.slane %v802, %v922
        %v924 = vsel %vm881, %v923, %v919
        %v925 = vlaneseq
        %v926 = vshrl.u32 %v925, 7
        %v927 = vsub.s32 %v864, %v926
        %v928 = vrot.slane %v805, %v927
        %v929 = vlaneseq
        %v930 = vshrl.u32 %v929, 7
        %v931 = vsub.s32 %v869, %v930
        %v932 = vrot.slane %v808, %v931
        %v933 = vsel %vm874, %v932, %v928
        %v934 = vlaneseq
        %v935 = vshrl.u32 %v934, 7
        %v936 = vsub.s32 %v876, %v935
        %v937 = vrot.slane %v811, %v936
        %v938 = vsel %vm881, %v937, %v933
        %v939 = vlaneseq
        %v940 = vshrl.u32 %v939, 7
        %v941 = vsub.s32 %v864, %v940
        %v942 = vrot.slane %v814, %v941
        %v943 = vlaneseq
        %v944 = vshrl.u32 %v943, 7
        %v945 = vsub.s32 %v869, %v944
        %v946 = vrot.slane %v817, %v945
        %v947 = vsel %vm874, %v946, %v942
        %v948 = vlaneseq
        %v949 = vshrl.u32 %v948, 7
        %v950 = vsub.s32 %v876, %v949
        %v951 = vrot.slane %v820, %v950
        %v952 = vsel %vm881, %v951, %v947
        %v953 = vlaneseq
        %v954 = vshrl.u32 %v953, 7
        %v955 = vsub.s32 %v864, %v954
        %v956 = vrot.slane %v823, %v955
        %v957 = vlaneseq
        %v958 = vshrl.u32 %v957, 7
        %v959 = vsub.s32 %v869, %v958
        %v960 = vrot.slane %v826, %v959
        %v961 = vsel %vm874, %v960, %v956
        %v962 = vlaneseq
        %v963 = vshrl.u32 %v962, 7
        %v964 = vsub.s32 %v876, %v963
        %v965 = vrot.slane %v829, %v964
        %v966 = vsel %vm881, %v965, %v961
        %v967 = vlaneseq
        %v968 = vshrl.u32 %v967, 7
        %v969 = vsub.s32 %v864, %v968
        %v970 = vrot.slane %v832, %v969
        %v971 = vlaneseq
        %v972 = vshrl.u32 %v971, 7
        %v973 = vsub.s32 %v869, %v972
        %v974 = vrot.slane %v835, %v973
        %v975 = vsel %vm874, %v974, %v970
        %v976 = vlaneseq
        %v977 = vshrl.u32 %v976, 7
        %v978 = vsub.s32 %v876, %v977
        %v979 = vrot.slane %v838, %v978
        %v980 = vsel %vm881, %v979, %v975
        %vm981 = vcmask 1041409
        %v982 = vsel %vm981, %v896, %v882
        %vm983 = vcmask 1042434
        %v984 = vsel %vm983, %v910, %v982
        %vm985 = vcmask 1043459
        %v986 = vsel %vm985, %v924, %v984
        %vm987 = vcmask 1044484
        %v988 = vsel %vm987, %v938, %v986
        %vm989 = vcmask 1045509
        %v990 = vsel %vm989, %v952, %v988
        %vm991 = vcmask 1046534
        %v992 = vsel %vm991, %v966, %v990
        %vm993 = vcmask 1047559
        %v994 = vsel %vm993, %v980, %v992
        %v997 = vsel %vm766, %v400, 0
        %v1000 = vsel %vm766, %v404, 0
        %v1003 = vsel %vm766, %v405, 0
        %1005 = vmatprep.subr.bf16.mxu0 0
        %1006 = vmatpush1.bf16.xpose.msra.mxu0 0
        %1007 = vmatprep.subr.bf16.mxu0 0
        %1008 = vmatpush1.bf16.xpose.msra.mxu0 0
        %1009 = vmatprep.subr.bf16.mxu0 0
        %1010 = vmatpush1.bf16.xpose.msra.mxu0 0
        %1011 = vmatprep.subr.bf16.mxu0 0
        %1012 = vmatpush1.bf16.xpose.msra.mxu0 0
        %1013 = vmatprep.subr.bf16.mxu0 0
        %1014 = vmatpush1.bf16.xpose.msra.mxu0 0
        %1015 = vmatprep.subr.bf16.mxu0 0
        %1016 = vmatpush1.bf16.xpose.msra.mxu0 0
        %1017 = vmatprep.subr.bf16.mxu0 0
        %1018 = vmatpush1.bf16.xpose.msra.mxu0 %v1003
        %1019 = vmatprep.subr.bf16.mxu0 0
        %1020 = vmatpush1.bf16.xpose.msra.mxu0 %v1000
        %1021 = vmatprep.subr.bf16.mxu0 0
        %1022 = vmatpush2.bf16.xpose.msra.mxu0 0
        %1023 = vmatprep.subr.bf16.mxu0 0
        %1024 = vmatpush2.bf16.xpose.msra.mxu0 0
        %1025 = vmatprep.subr.bf16.mxu0 0
        %1026 = vmatpush2.bf16.xpose.msra.mxu0 0
        %1027 = vmatprep.subr.bf16.mxu0 0
        %1028 = vmatpush2.bf16.xpose.msra.mxu0 0
        %1029 = vmatprep.subr.bf16.mxu0 0
        %1030 = vmatpush2.bf16.xpose.msra.mxu0 0
        %1031 = vmatprep.subr.bf16.mxu0 0
        %1032 = vmatpush2.bf16.xpose.msra.mxu0 0
        %1033 = vmatprep.subr.bf16.mxu0 0
        %1034 = vmatpush2.bf16.xpose.msra.mxu0 0
        %1035 = vmatprep.subr.bf16.mxu0 0
        %1036 = vmatpush2.bf16.xpose.msra.mxu0 0
        %1037 = vmatprep.mubr.bf16.mxu0 0
        %1038 = vmatmul.mubr.bf16.gmra.mxu0 %v997
        %v1039 = vpop.f32.mrf.mxu0
        %v1040 = vadd.f32 %v994, %v1039
        %v1041 = vpop.f32.mrf.mxu0
        %v1042 = vpop.f32.mrf.mxu0
        %v1043 = vpop.f32.mrf.mxu0
        %1044 = vdwg.mxu0
        %vm1045 = vcmask 195584
        %v1046 = vsel %vm1045, %v1040, -inf
        %1047 = vmax.xlane.f32.xlu0 %v1046
        %v1048 = vpop.xlane.xlu0 %1047
        %v1049 = vsub.f32 %v1040, %v1048
        %v1050 = vmul.f32 %v1049, 1.442695
        %v1051 = vpow.pop %v1050
        %v1052 = vsel %vm1045, %v1051, 0.0
        %1053 = vadd.xlane.f32.xlu0 %v1052
        %v1054 = vpop.xlane.xlu0 %1053
        %v1055 = vrcp.pop %v1054
        %v1056 = vmul.f32 %v1051, %v1055
        %v1057 = vpack.c.bf16 %v1056, %v1056
        %v1059 = vsel %vm1045, %v1057, 0
        %vm1061 = vcmask 1043456
        %v1063 = vsel %vm1061, %v410, 0
        %1065 = vmatprep.subr.bf16.mxu0 0
        %1066 = vmatpush1.bf16.msra.mxu0 0
        %1067 = vmatprep.subr.bf16.mxu0 0
        %1068 = vmatpush1.bf16.msra.mxu0 0
        %1069 = vmatprep.subr.bf16.mxu0 0
        %1070 = vmatpush1.bf16.msra.mxu0 0
        %1071 = vmatprep.subr.bf16.mxu0 0
        %1072 = vmatpush1.bf16.msra.mxu0 0
        %1073 = vmatprep.subr.bf16.mxu0 0
        %1074 = vmatpush1.bf16.msra.mxu0 0
        %1075 = vmatprep.subr.bf16.mxu0 0
        %1076 = vmatpush1.bf16.msra.mxu0 0
        %1077 = vmatprep.subr.bf16.mxu0 0
        %1078 = vmatpush1.bf16.msra.mxu0 %v1063
        %1079 = vmatprep.subr.bf16.mxu0 0
        %1080 = vmatpush1.bf16.msra.mxu0 %v409
        %1081 = vmatprep.subr.bf16.mxu0 0
        %1082 = vmatpush2.bf16.msra.mxu0 0
        %1083 = vmatprep.subr.bf16.mxu0 0
        %1084 = vmatpush2.bf16.msra.mxu0 0
        %1085 = vmatprep.subr.bf16.mxu0 0
        %1086 = vmatpush2.bf16.msra.mxu0 0
        %1087 = vmatprep.subr.bf16.mxu0 0
        %1088 = vmatpush2.bf16.msra.mxu0 0
        %1089 = vmatprep.subr.bf16.mxu0 0
        %1090 = vmatpush2.bf16.msra.mxu0 0
        %1091 = vmatprep.subr.bf16.mxu0 0
        %1092 = vmatpush2.bf16.msra.mxu0 0
        %1093 = vmatprep.subr.bf16.mxu0 0
        %1094 = vmatpush2.bf16.msra.mxu0 0
        %1095 = vmatprep.subr.bf16.mxu0 0
        %1096 = vmatpush2.bf16.msra.mxu0 0
        %1097 = vmatprep.mubr.bf16.mxu0 0
        %1098 = vmatmul.mubr.bf16.gmra.mxu0 %v1059
        %v1099 = vpop.f32.mrf.mxu0
        %v1100 = vadd.f32 0.0, %v1099
        %v1101 = vpop.f32.mrf.mxu0
        %v1102 = vpop.f32.mrf.mxu0
        %v1103 = vpop.f32.mrf.mxu0
        %1104 = vdwg.mxu0
        %1105 = vst.msk [vmem:[%s397] sm:$0xff] %vm766, %v1100
        %1106 = vst.msk [vmem:[%s360] sm:$0xff] %vm1045, %v1056
        %1131 = vrot.lane.b32.xlu0 %v742, 112
        %v1132 = vpop.permute.xlu0 %1131
        %1133 = vrot.lane.b32.xlu0 %v743, 112
        %v1134 = vpop.permute.xlu0 %1133
        %1135 = vrot.lane.b32.xlu0 %v744, 112
        %v1136 = vpop.permute.xlu0 %1135
        %1137 = vrot.lane.b32.xlu0 %v745, 112
        %v1138 = vpop.permute.xlu0 %1137
        %1139 = vrot.lane.b32.xlu0 %v746, 112
        %v1140 = vpop.permute.xlu0 %1139
        %1141 = vrot.lane.b32.xlu0 %v747, 112
        %v1142 = vpop.permute.xlu0 %1141
        %1143 = vrot.lane.b32.xlu0 %v748, 112
        %v1144 = vpop.permute.xlu0 %1143
        %1145 = vrot.lane.b32.xlu0 %v749, 112
        %v1146 = vpop.permute.xlu0 %1145
        %1147 = vrot.lane.b32.xlu0 %v750, 112
        %v1148 = vpop.permute.xlu0 %1147
        %1149 = vrot.lane.b32.xlu0 %v751, 112
        %v1150 = vpop.permute.xlu0 %1149
        %1151 = vrot.lane.b32.xlu0 %v752, 112
        %v1152 = vpop.permute.xlu0 %1151
        %1153 = vrot.lane.b32.xlu0 %v753, 112
        %v1154 = vpop.permute.xlu0 %1153
        %1155 = vrot.lane.b32.xlu0 %v754, 112
        %v1156 = vpop.permute.xlu0 %1155
        %1157 = vrot.lane.b32.xlu0 %v755, 112
        %v1158 = vpop.permute.xlu0 %1157
        %1159 = vrot.lane.b32.xlu0 %v756, 112
        %v1160 = vpop.permute.xlu0 %1159
        %1161 = vrot.lane.b32.xlu0 %v757, 112
        %v1162 = vpop.permute.xlu0 %1161
        %1163 = vrot.lane.b32.xlu0 %v758, 112
        %v1164 = vpop.permute.xlu0 %1163
        %1165 = vrot.lane.b32.xlu0 %v759, 112
        %v1166 = vpop.permute.xlu0 %1165
        %1167 = vrot.lane.b32.xlu0 %v760, 112
        %v1168 = vpop.permute.xlu0 %1167
        %1169 = vrot.lane.b32.xlu0 %v761, 112
        %v1170 = vpop.permute.xlu0 %1169
        %1171 = vrot.lane.b32.xlu0 %v762, 112
        %v1172 = vpop.permute.xlu0 %1171
        %1173 = vrot.lane.b32.xlu0 %v763, 112
        %v1174 = vpop.permute.xlu0 %1173
        %1175 = vrot.lane.b32.xlu0 %v764, 112
        %v1176 = vpop.permute.xlu0 %1175
        %1177 = vrot.lane.b32.xlu0 %v765, 112
        %v1178 = vpop.permute.xlu0 %1177
        %v1203 = vsel %vm766, %v1132, 0.0
        %1204 = vadd.xlane.f32.xlu0 %v1203
        %v1205 = vpop.xlane.xlu0 %1204
        %v1206 = vsel %vm766, %v1134, 0.0
        %1207 = vadd.xlane.f32.xlu0 %v1206
        %v1208 = vpop.xlane.xlu0 %1207
        %v1209 = vsel %vm766, %v1136, 0.0
        %1210 = vadd.xlane.f32.xlu0 %v1209
        %v1211 = vpop.xlane.xlu0 %1210
        %v1212 = vsel %vm766, %v1138, 0.0
        %1213 = vadd.xlane.f32.xlu0 %v1212
        %v1214 = vpop.xlane.xlu0 %1213
        %v1215 = vsel %vm766, %v1140, 0.0
        %1216 = vadd.xlane.f32.xlu0 %v1215
        %v1217 = vpop.xlane.xlu0 %1216
        %v1218 = vsel %vm766, %v1142, 0.0
        %1219 = vadd.xlane.f32.xlu0 %v1218
        %v1220 = vpop.xlane.xlu0 %1219
        %v1221 = vsel %vm766, %v1144, 0.0
        %1222 = vadd.xlane.f32.xlu0 %v1221
        %v1223 = vpop.xlane.xlu0 %1222
        %v1224 = vsel %vm766, %v1146, 0.0
        %1225 = vadd.xlane.f32.xlu0 %v1224
        %v1226 = vpop.xlane.xlu0 %1225
        %v1227 = vsel %vm766, %v1148, 0.0
        %1228 = vadd.xlane.f32.xlu0 %v1227
        %v1229 = vpop.xlane.xlu0 %1228
        %v1230 = vsel %vm766, %v1150, 0.0
        %1231 = vadd.xlane.f32.xlu0 %v1230
        %v1232 = vpop.xlane.xlu0 %1231
        %v1233 = vsel %vm766, %v1152, 0.0
        %1234 = vadd.xlane.f32.xlu0 %v1233
        %v1235 = vpop.xlane.xlu0 %1234
        %v1236 = vsel %vm766, %v1154, 0.0
        %1237 = vadd.xlane.f32.xlu0 %v1236
        %v1238 = vpop.xlane.xlu0 %1237
        %v1239 = vsel %vm766, %v1156, 0.0
        %1240 = vadd.xlane.f32.xlu0 %v1239
        %v1241 = vpop.xlane.xlu0 %1240
        %v1242 = vsel %vm766, %v1158, 0.0
        %1243 = vadd.xlane.f32.xlu0 %v1242
        %v1244 = vpop.xlane.xlu0 %1243
        %v1245 = vsel %vm766, %v1160, 0.0
        %1246 = vadd.xlane.f32.xlu0 %v1245
        %v1247 = vpop.xlane.xlu0 %1246
        %v1248 = vsel %vm766, %v1162, 0.0
        %1249 = vadd.xlane.f32.xlu0 %v1248
        %v1250 = vpop.xlane.xlu0 %1249
        %v1251 = vsel %vm766, %v1164, 0.0
        %1252 = vadd.xlane.f32.xlu0 %v1251
        %v1253 = vpop.xlane.xlu0 %1252
        %v1254 = vsel %vm766, %v1166, 0.0
        %1255 = vadd.xlane.f32.xlu0 %v1254
        %v1256 = vpop.xlane.xlu0 %1255
        %v1257 = vsel %vm766, %v1168, 0.0
        %1258 = vadd.xlane.f32.xlu0 %v1257
        %v1259 = vpop.xlane.xlu0 %1258
        %v1260 = vsel %vm766, %v1170, 0.0
        %1261 = vadd.xlane.f32.xlu0 %v1260
        %v1262 = vpop.xlane.xlu0 %1261
        %v1263 = vsel %vm766, %v1172, 0.0
        %1264 = vadd.xlane.f32.xlu0 %v1263
        %v1265 = vpop.xlane.xlu0 %1264
        %v1266 = vsel %vm766, %v1174, 0.0
        %1267 = vadd.xlane.f32.xlu0 %v1266
        %v1268 = vpop.xlane.xlu0 %1267
        %v1269 = vsel %vm766, %v1176, 0.0
        %1270 = vadd.xlane.f32.xlu0 %v1269
        %v1271 = vpop.xlane.xlu0 %1270
        %v1272 = vsel %vm766, %v1178, 0.0
        %1273 = vadd.xlane.f32.xlu0 %v1272
        %v1274 = vpop.xlane.xlu0 %1273
        %1276 = vrot.lane.b32.xlu0 %v400, 112
        %v1277 = vpop.permute.xlu0 %1276
        %1280 = vrot.lane.b32.xlu0 %v404, 112
        %v1281 = vpop.permute.xlu0 %1280
        %1282 = vrot.lane.b32.xlu0 %v405, 112
        %v1283 = vpop.permute.xlu0 %1282
        %v1308 = vlaneseq
        %v1309 = vshrl.u32 %v1308, 7
        %v1310 = vsub.s32 %v864, %v1309
        %v1311 = vrot.slane %v1205, %v1310
        %v1312 = vlaneseq
        %v1313 = vshrl.u32 %v1312, 7
        %v1314 = vsub.s32 %v869, %v1313
        %v1315 = vrot.slane %v1208, %v1314
        %v1316 = vsel %vm874, %v1315, %v1311
        %v1317 = vlaneseq
        %v1318 = vshrl.u32 %v1317, 7
        %v1319 = vsub.s32 %v876, %v1318
        %v1320 = vrot.slane %v1211, %v1319
        %v1321 = vsel %vm881, %v1320, %v1316
        %v1322 = vlaneseq
        %v1323 = vshrl.u32 %v1322, 7
        %v1324 = vsub.s32 %v864, %v1323
        %v1325 = vrot.slane %v1214, %v1324
        %v1326 = vlaneseq
        %v1327 = vshrl.u32 %v1326, 7
        %v1328 = vsub.s32 %v869, %v1327
        %v1329 = vrot.slane %v1217, %v1328
        %v1330 = vsel %vm874, %v1329, %v1325
        %v1331 = vlaneseq
        %v1332 = vshrl.u32 %v1331, 7
        %v1333 = vsub.s32 %v876, %v1332
        %v1334 = vrot.slane %v1220, %v1333
        %v1335 = vsel %vm881, %v1334, %v1330
        %v1336 = vlaneseq
        %v1337 = vshrl.u32 %v1336, 7
        %v1338 = vsub.s32 %v864, %v1337
        %v1339 = vrot.slane %v1223, %v1338
        %v1340 = vlaneseq
        %v1341 = vshrl.u32 %v1340, 7
        %v1342 = vsub.s32 %v869, %v1341
        %v1343 = vrot.slane %v1226, %v1342
        %v1344 = vsel %vm874, %v1343, %v1339
        %v1345 = vlaneseq
        %v1346 = vshrl.u32 %v1345, 7
        %v1347 = vsub.s32 %v876, %v1346
        %v1348 = vrot.slane %v1229, %v1347
        %v1349 = vsel %vm881, %v1348, %v1344
        %v1350 = vlaneseq
        %v1351 = vshrl.u32 %v1350, 7
        %v1352 = vsub.s32 %v864, %v1351
        %v1353 = vrot.slane %v1232, %v1352
        %v1354 = vlaneseq
        %v1355 = vshrl.u32 %v1354, 7
        %v1356 = vsub.s32 %v869, %v1355
        %v1357 = vrot.slane %v1235, %v1356
        %v1358 = vsel %vm874, %v1357, %v1353
        %v1359 = vlaneseq
        %v1360 = vshrl.u32 %v1359, 7
        %v1361 = vsub.s32 %v876, %v1360
        %v1362 = vrot.slane %v1238, %v1361
        %v1363 = vsel %vm881, %v1362, %v1358
        %v1364 = vlaneseq
        %v1365 = vshrl.u32 %v1364, 7
        %v1366 = vsub.s32 %v864, %v1365
        %v1367 = vrot.slane %v1241, %v1366
        %v1368 = vlaneseq
        %v1369 = vshrl.u32 %v1368, 7
        %v1370 = vsub.s32 %v869, %v1369
        %v1371 = vrot.slane %v1244, %v1370
        %v1372 = vsel %vm874, %v1371, %v1367
        %v1373 = vlaneseq
        %v1374 = vshrl.u32 %v1373, 7
        %v1375 = vsub.s32 %v876, %v1374
        %v1376 = vrot.slane %v1247, %v1375
        %v1377 = vsel %vm881, %v1376, %v1372
        %v1378 = vlaneseq
        %v1379 = vshrl.u32 %v1378, 7
        %v1380 = vsub.s32 %v864, %v1379
        %v1381 = vrot.slane %v1250, %v1380
        %v1382 = vlaneseq
        %v1383 = vshrl.u32 %v1382, 7
        %v1384 = vsub.s32 %v869, %v1383
        %v1385 = vrot.slane %v1253, %v1384
        %v1386 = vsel %vm874, %v1385, %v1381
        %v1387 = vlaneseq
        %v1388 = vshrl.u32 %v1387, 7
        %v1389 = vsub.s32 %v876, %v1388
        %v1390 = vrot.slane %v1256, %v1389
        %v1391 = vsel %vm881, %v1390, %v1386
        %v1392 = vlaneseq
        %v1393 = vshrl.u32 %v1392, 7
        %v1394 = vsub.s32 %v864, %v1393
        %v1395 = vrot.slane %v1259, %v1394
        %v1396 = vlaneseq
        %v1397 = vshrl.u32 %v1396, 7
        %v1398 = vsub.s32 %v869, %v1397
        %v1399 = vrot.slane %v1262, %v1398
        %v1400 = vsel %vm874, %v1399, %v1395
        %v1401 = vlaneseq
        %v1402 = vshrl.u32 %v1401, 7
        %v1403 = vsub.s32 %v876, %v1402
        %v1404 = vrot.slane %v1265, %v1403
        %v1405 = vsel %vm881, %v1404, %v1400
        %v1406 = vlaneseq
        %v1407 = vshrl.u32 %v1406, 7
        %v1408 = vsub.s32 %v864, %v1407
        %v1409 = vrot.slane %v1268, %v1408
        %v1410 = vlaneseq
        %v1411 = vshrl.u32 %v1410, 7
        %v1412 = vsub.s32 %v869, %v1411
        %v1413 = vrot.slane %v1271, %v1412
        %v1414 = vsel %vm874, %v1413, %v1409
        %v1415 = vlaneseq
        %v1416 = vshrl.u32 %v1415, 7
        %v1417 = vsub.s32 %v876, %v1416
        %v1418 = vrot.slane %v1274, %v1417
        %v1419 = vsel %vm881, %v1418, %v1414
        %v1420 = vsel %vm981, %v1335, %v1321
        %v1421 = vsel %vm983, %v1349, %v1420
        %v1422 = vsel %vm985, %v1363, %v1421
        %v1423 = vsel %vm987, %v1377, %v1422
        %v1424 = vsel %vm989, %v1391, %v1423
        %v1425 = vsel %vm991, %v1405, %v1424
        %v1426 = vsel %vm993, %v1419, %v1425
        %v1429 = vsel %vm766, %v1277, 0
        %v1432 = vsel %vm766, %v1281, 0
        %v1435 = vsel %vm766, %v1283, 0
        %1437 = vmatprep.subr.bf16.mxu0 0
        %1438 = vmatpush1.bf16.xpose.msra.mxu0 0
        %1439 = vmatprep.subr.bf16.mxu0 0
        %1440 = vmatpush1.bf16.xpose.msra.mxu0 0
        %1441 = vmatprep.subr.bf16.mxu0 0
        %1442 = vmatpush1.bf16.xpose.msra.mxu0 0
        %1443 = vmatprep.subr.bf16.mxu0 0
        %1444 = vmatpush1.bf16.xpose.msra.mxu0 0
        %1445 = vmatprep.subr.bf16.mxu0 0
        %1446 = vmatpush1.bf16.xpose.msra.mxu0 0
        %1447 = vmatprep.subr.bf16.mxu0 0
        %1448 = vmatpush1.bf16.xpose.msra.mxu0 0
        %1449 = vmatprep.subr.bf16.mxu0 0
        %1450 = vmatpush1.bf16.xpose.msra.mxu0 %v1435
        %1451 = vmatprep.subr.bf16.mxu0 0
        %1452 = vmatpush1.bf16.xpose.msra.mxu0 %v1432
        %1453 = vmatprep.subr.bf16.mxu0 0
        %1454 = vmatpush2.bf16.xpose.msra.mxu0 0
        %1455 = vmatprep.subr.bf16.mxu0 0
        %1456 = vmatpush2.bf16.xpose.msra.mxu0 0
        %1457 = vmatprep.subr.bf16.mxu0 0
        %1458 = vmatpush2.bf16.xpose.msra.mxu0 0
        %1459 = vmatprep.subr.bf16.mxu0 0
        %1460 = vmatpush2.bf16.xpose.msra.mxu0 0
        %1461 = vmatprep.subr.bf16.mxu0 0
        %1462 = vmatpush2.bf16.xpose.msra.mxu0 0
        %1463 = vmatprep.subr.bf16.mxu0 0
        %1464 = vmatpush2.bf16.xpose.msra.mxu0 0
        %1465 = vmatprep.subr.bf16.mxu0 0
        %1466 = vmatpush2.bf16.xpose.msra.mxu0 0
        %1467 = vmatprep.subr.bf16.mxu0 0
        %1468 = vmatpush2.bf16.xpose.msra.mxu0 0
        %1469 = vmatprep.mubr.bf16.mxu0 0
        %1470 = vmatmul.mubr.bf16.gmra.mxu0 %v1429
        %v1471 = vpop.f32.mrf.mxu0
        %v1472 = vadd.f32 %v1426, %v1471
        %v1473 = vpop.f32.mrf.mxu0
        %v1474 = vpop.f32.mrf.mxu0
        %v1475 = vpop.f32.mrf.mxu0
        %1476 = vdwg.mxu0
        %v1477 = vsel %vm1045, %v1472, -inf
        %1478 = vmax.xlane.f32.xlu0 %v1477
        %v1479 = vpop.xlane.xlu0 %1478
        %v1480 = vsub.f32 %v1472, %v1479
        %v1481 = vmul.f32 %v1480, 1.442695
        %v1482 = vpow.pop %v1481
        %v1483 = vsel %vm1045, %v1482, 0.0
        %1484 = vadd.xlane.f32.xlu0 %v1483
        %v1485 = vpop.xlane.xlu0 %1484
        %v1486 = vrcp.pop %v1485
        %v1487 = vmul.f32 %v1482, %v1486
        %v1488 = vpack.c.bf16 %v1487, %v1487
        %1491 = vrot.lane.b32.xlu0 %v409, 112
        %v1492 = vpop.permute.xlu0 %1491
        %1493 = vrot.lane.b32.xlu0 %v410, 112
        %v1494 = vpop.permute.xlu0 %1493
        %v1497 = vsel %vm1045, %v1488, 0
        %v1500 = vsel %vm1061, %v1494, 0
        %1502 = vmatprep.subr.bf16.mxu0 0
        %1503 = vmatpush1.bf16.msra.mxu0 0
        %1504 = vmatprep.subr.bf16.mxu0 0
        %1505 = vmatpush1.bf16.msra.mxu0 0
        %1506 = vmatprep.subr.bf16.mxu0 0
        %1507 = vmatpush1.bf16.msra.mxu0 0
        %1508 = vmatprep.subr.bf16.mxu0 0
        %1509 = vmatpush1.bf16.msra.mxu0 0
        %1510 = vmatprep.subr.bf16.mxu0 0
        %1511 = vmatpush1.bf16.msra.mxu0 0
        %1512 = vmatprep.subr.bf16.mxu0 0
        %1513 = vmatpush1.bf16.msra.mxu0 0
        %1514 = vmatprep.subr.bf16.mxu0 0
        %1515 = vmatpush1.bf16.msra.mxu0 %v1500
        %1516 = vmatprep.subr.bf16.mxu0 0
        %1517 = vmatpush1.bf16.msra.mxu0 %v1492
        %1518 = vmatprep.subr.bf16.mxu0 0
        %1519 = vmatpush2.bf16.msra.mxu0 0
        %1520 = vmatprep.subr.bf16.mxu0 0
        %1521 = vmatpush2.bf16.msra.mxu0 0
        %1522 = vmatprep.subr.bf16.mxu0 0
        %1523 = vmatpush2.bf16.msra.mxu0 0
        %1524 = vmatprep.subr.bf16.mxu0 0
        %1525 = vmatpush2.bf16.msra.mxu0 0
        %1526 = vmatprep.subr.bf16.mxu0 0
        %1527 = vmatpush2.bf16.msra.mxu0 0
        %1528 = vmatprep.subr.bf16.mxu0 0
        %1529 = vmatpush2.bf16.msra.mxu0 0
        %1530 = vmatprep.subr.bf16.mxu0 0
        %1531 = vmatpush2.bf16.msra.mxu0 0
        %1532 = vmatprep.subr.bf16.mxu0 0
        %1533 = vmatpush2.bf16.msra.mxu0 0
        %1534 = vmatprep.mubr.bf16.mxu0 0
        %1535 = vmatmul.mubr.bf16.gmra.mxu0 %v1497
        %v1536 = vpop.f32.mrf.mxu0
        %v1537 = vadd.f32 0.0, %v1536
        %v1538 = vpop.f32.mrf.mxu0
        %v1539 = vpop.f32.mrf.mxu0
        %v1540 = vpop.f32.mrf.mxu0
        %1541 = vdwg.mxu0
        %1543 = vrot.lane.b32.xlu0 %v1537, 16
        %v1544 = vpop.permute.xlu0 %1543
        %vm1546 = vcmask 261248
        %1547 = vst.msk [vmem:[%s397] sm:$0xff] %vm1546, %v1544
        %s1548 = scalar_lea.vmem %s360, 8 [#allocation2]
        %1549 = vst.msk [vmem:[%s1548] sm:$0xff] %vm1045, %v1487
        %1550 = vrot.lane.b32.xlu0 %v742, 96
        %v1551 = vpop.permute.xlu0 %1550
        %1552 = vrot.lane.b32.xlu0 %v743, 96
        %v1553 = vpop.permute.xlu0 %1552
        %1554 = vrot.lane.b32.xlu0 %v744, 96
        %v1555 = vpop.permute.xlu0 %1554
        %1556 = vrot.lane.b32.xlu0 %v745, 96
        %v1557 = vpop.permute.xlu0 %1556
        %1558 = vrot.lane.b32.xlu0 %v746, 96
        %v1559 = vpop.permute.xlu0 %1558
        %1560 = vrot.lane.b32.xlu0 %v747, 96
        %v1561 = vpop.permute.xlu0 %1560
        %1562 = vrot.lane.b32.xlu0 %v748, 96
        %v1563 = vpop.permute.xlu0 %1562
        %1564 = vrot.lane.b32.xlu0 %v749, 96
        %v1565 = vpop.permute.xlu0 %1564
        %1566 = vrot.lane.b32.xlu0 %v750, 96
        %v1567 = vpop.permute.xlu0 %1566
        %1568 = vrot.lane.b32.xlu0 %v751, 96
        %v1569 = vpop.permute.xlu0 %1568
        %1570 = vrot.lane.b32.xlu0 %v752, 96
        %v1571 = vpop.permute.xlu0 %1570
        %1572 = vrot.lane.b32.xlu0 %v753, 96
        %v1573 = vpop.permute.xlu0 %1572
        %1574 = vrot.lane.b32.xlu0 %v754, 96
        %v1575 = vpop.permute.xlu0 %1574
        %1576 = vrot.lane.b32.xlu0 %v755, 96
        %v1577 = vpop.permute.xlu0 %1576
        %1578 = vrot.lane.b32.xlu0 %v756, 96
        %v1579 = vpop.permute.xlu0 %1578
        %1580 = vrot.lane.b32.xlu0 %v757, 96
        %v1581 = vpop.permute.xlu0 %1580
        %1582 = vrot.lane.b32.xlu0 %v758, 96
        %v1583 = vpop.permute.xlu0 %1582
        %1584 = vrot.lane.b32.xlu0 %v759, 96
        %v1585 = vpop.permute.xlu0 %1584
        %1586 = vrot.lane.b32.xlu0 %v760, 96
        %v1587 = vpop.permute.xlu0 %1586
        %1588 = vrot.lane.b32.xlu0 %v761, 96
        %v1589 = vpop.permute.xlu0 %1588
        %1590 = vrot.lane.b32.xlu0 %v762, 96
        %v1591 = vpop.permute.xlu0 %1590
        %1592 = vrot.lane.b32.xlu0 %v763, 96
        %v1593 = vpop.permute.xlu0 %1592
        %1594 = vrot.lane.b32.xlu0 %v764, 96
        %v1595 = vpop.permute.xlu0 %1594
        %1596 = vrot.lane.b32.xlu0 %v765, 96
        %v1597 = vpop.permute.xlu0 %1596
        %v1622 = vsel %vm766, %v1551, 0.0
        %1623 = vadd.xlane.f32.xlu0 %v1622
        %v1624 = vpop.xlane.xlu0 %1623
        %v1625 = vsel %vm766, %v1553, 0.0
        %1626 = vadd.xlane.f32.xlu0 %v1625
        %v1627 = vpop.xlane.xlu0 %1626
        %v1628 = vsel %vm766, %v1555, 0.0
        %1629 = vadd.xlane.f32.xlu0 %v1628
        %v1630 = vpop.xlane.xlu0 %1629
        %v1631 = vsel %vm766, %v1557, 0.0
        %1632 = vadd.xlane.f32.xlu0 %v1631
        %v1633 = vpop.xlane.xlu0 %1632
        %v1634 = vsel %vm766, %v1559, 0.0
        %1635 = vadd.xlane.f32.xlu0 %v1634
        %v1636 = vpop.xlane.xlu0 %1635
        %v1637 = vsel %vm766, %v1561, 0.0
        %1638 = vadd.xlane.f32.xlu0 %v1637
        %v1639 = vpop.xlane.xlu0 %1638
        %v1640 = vsel %vm766, %v1563, 0.0
        %1641 = vadd.xlane.f32.xlu0 %v1640
        %v1642 = vpop.xlane.xlu0 %1641
        %v1643 = vsel %vm766, %v1565, 0.0
        %1644 = vadd.xlane.f32.xlu0 %v1643
        %v1645 = vpop.xlane.xlu0 %1644
        %v1646 = vsel %vm766, %v1567, 0.0
        %1647 = vadd.xlane.f32.xlu0 %v1646
        %v1648 = vpop.xlane.xlu0 %1647
        %v1649 = vsel %vm766, %v1569, 0.0
        %1650 = vadd.xlane.f32.xlu0 %v1649
        %v1651 = vpop.xlane.xlu0 %1650
        %v1652 = vsel %vm766, %v1571, 0.0
        %1653 = vadd.xlane.f32.xlu0 %v1652
        %v1654 = vpop.xlane.xlu0 %1653
        %v1655 = vsel %vm766, %v1573, 0.0
        %1656 = vadd.xlane.f32.xlu0 %v1655
        %v1657 = vpop.xlane.xlu0 %1656
        %v1658 = vsel %vm766, %v1575, 0.0
        %1659 = vadd.xlane.f32.xlu0 %v1658
        %v1660 = vpop.xlane.xlu0 %1659
        %v1661 = vsel %vm766, %v1577, 0.0
        %1662 = vadd.xlane.f32.xlu0 %v1661
        %v1663 = vpop.xlane.xlu0 %1662
        %v1664 = vsel %vm766, %v1579, 0.0
        %1665 = vadd.xlane.f32.xlu0 %v1664
        %v1666 = vpop.xlane.xlu0 %1665
        %v1667 = vsel %vm766, %v1581, 0.0
        %1668 = vadd.xlane.f32.xlu0 %v1667
        %v1669 = vpop.xlane.xlu0 %1668
        %v1670 = vsel %vm766, %v1583, 0.0
        %1671 = vadd.xlane.f32.xlu0 %v1670
        %v1672 = vpop.xlane.xlu0 %1671
        %v1673 = vsel %vm766, %v1585, 0.0
        %1674 = vadd.xlane.f32.xlu0 %v1673
        %v1675 = vpop.xlane.xlu0 %1674
        %v1676 = vsel %vm766, %v1587, 0.0
        %1677 = vadd.xlane.f32.xlu0 %v1676
        %v1678 = vpop.xlane.xlu0 %1677
        %v1679 = vsel %vm766, %v1589, 0.0
        %1680 = vadd.xlane.f32.xlu0 %v1679
        %v1681 = vpop.xlane.xlu0 %1680
        %v1682 = vsel %vm766, %v1591, 0.0
        %1683 = vadd.xlane.f32.xlu0 %v1682
        %v1684 = vpop.xlane.xlu0 %1683
        %v1685 = vsel %vm766, %v1593, 0.0
        %1686 = vadd.xlane.f32.xlu0 %v1685
        %v1687 = vpop.xlane.xlu0 %1686
        %v1688 = vsel %vm766, %v1595, 0.0
        %1689 = vadd.xlane.f32.xlu0 %v1688
        %v1690 = vpop.xlane.xlu0 %1689
        %v1691 = vsel %vm766, %v1597, 0.0
        %1692 = vadd.xlane.f32.xlu0 %v1691
        %v1693 = vpop.xlane.xlu0 %1692
        %1694 = vrot.lane.b32.xlu0 %v400, 96
        %v1695 = vpop.permute.xlu0 %1694
        %1696 = vrot.lane.b32.xlu0 %v404, 96
        %v1697 = vpop.permute.xlu0 %1696
        %1698 = vrot.lane.b32.xlu0 %v405, 96
        %v1699 = vpop.permute.xlu0 %1698
        %v1724 = vlaneseq
        %v1725 = vshrl.u32 %v1724, 7
        %v1726 = vsub.s32 %v864, %v1725
        %v1727 = vrot.slane %v1624, %v1726
        %v1728 = vlaneseq
        %v1729 = vshrl.u32 %v1728, 7
        %v1730 = vsub.s32 %v869, %v1729
        %v1731 = vrot.slane %v1627, %v1730
        %v1732 = vsel %vm874, %v1731, %v1727
        %v1733 = vlaneseq
        %v1734 = vshrl.u32 %v1733, 7
        %v1735 = vsub.s32 %v876, %v1734
        %v1736 = vrot.slane %v1630, %v1735
        %v1737 = vsel %vm881, %v1736, %v1732
        %v1738 = vlaneseq
        %v1739 = vshrl.u32 %v1738, 7
        %v1740 = vsub.s32 %v864, %v1739
        %v1741 = vrot.slane %v1633, %v1740
        %v1742 = vlaneseq
        %v1743 = vshrl.u32 %v1742, 7
        %v1744 = vsub.s32 %v869, %v1743
        %v1745 = vrot.slane %v1636, %v1744
        %v1746 = vsel %vm874, %v1745, %v1741
        %v1747 = vlaneseq
        %v1748 = vshrl.u32 %v1747, 7
        %v1749 = vsub.s32 %v876, %v1748
        %v1750 = vrot.slane %v1639, %v1749
        %v1751 = vsel %vm881, %v1750, %v1746
        %v1752 = vlaneseq
        %v1753 = vshrl.u32 %v1752, 7
        %v1754 = vsub.s32 %v864, %v1753
        %v1755 = vrot.slane %v1642, %v1754
        %v1756 = vlaneseq
        %v1757 = vshrl.u32 %v1756, 7
        %v1758 = vsub.s32 %v869, %v1757
        %v1759 = vrot.slane %v1645, %v1758
        %v1760 = vsel %vm874, %v1759, %v1755
        %v1761 = vlaneseq
        %v1762 = vshrl.u32 %v1761, 7
        %v1763 = vsub.s32 %v876, %v1762
        %v1764 = vrot.slane %v1648, %v1763
        %v1765 = vsel %vm881, %v1764, %v1760
        %v1766 = vlaneseq
        %v1767 = vshrl.u32 %v1766, 7
        %v1768 = vsub.s32 %v864, %v1767
        %v1769 = vrot.slane %v1651, %v1768
        %v1770 = vlaneseq
        %v1771 = vshrl.u32 %v1770, 7
        %v1772 = vsub.s32 %v869, %v1771
        %v1773 = vrot.slane %v1654, %v1772
        %v1774 = vsel %vm874, %v1773, %v1769
        %v1775 = vlaneseq
        %v1776 = vshrl.u32 %v1775, 7
        %v1777 = vsub.s32 %v876, %v1776
        %v1778 = vrot.slane %v1657, %v1777
        %v1779 = vsel %vm881, %v1778, %v1774
        %v1780 = vlaneseq
        %v1781 = vshrl.u32 %v1780, 7
        %v1782 = vsub.s32 %v864, %v1781
        %v1783 = vrot.slane %v1660, %v1782
        %v1784 = vlaneseq
        %v1785 = vshrl.u32 %v1784, 7
        %v1786 = vsub.s32 %v869, %v1785
        %v1787 = vrot.slane %v1663, %v1786
        %v1788 = vsel %vm874, %v1787, %v1783
        %v1789 = vlaneseq
        %v1790 = vshrl.u32 %v1789, 7
        %v1791 = vsub.s32 %v876, %v1790
        %v1792 = vrot.slane %v1666, %v1791
        %v1793 = vsel %vm881, %v1792, %v1788
        %v1794 = vlaneseq
        %v1795 = vshrl.u32 %v1794, 7
        %v1796 = vsub.s32 %v864, %v1795
        %v1797 = vrot.slane %v1669, %v1796
        %v1798 = vlaneseq
        %v1799 = vshrl.u32 %v1798, 7
        %v1800 = vsub.s32 %v869, %v1799
        %v1801 = vrot.slane %v1672, %v1800
        %v1802 = vsel %vm874, %v1801, %v1797
        %v1803 = vlaneseq
        %v1804 = vshrl.u32 %v1803, 7
        %v1805 = vsub.s32 %v876, %v1804
        %v1806 = vrot.slane %v1675, %v1805
        %v1807 = vsel %vm881, %v1806, %v1802
        %v1808 = vlaneseq
        %v1809 = vshrl.u32 %v1808, 7
        %v1810 = vsub.s32 %v864, %v1809
        %v1811 = vrot.slane %v1678, %v1810
        %v1812 = vlaneseq
        %v1813 = vshrl.u32 %v1812, 7
        %v1814 = vsub.s32 %v869, %v1813
        %v1815 = vrot.slane %v1681, %v1814
        %v1816 = vsel %vm874, %v1815, %v1811
        %v1817 = vlaneseq
        %v1818 = vshrl.u32 %v1817, 7
        %v1819 = vsub.s32 %v876, %v1818
        %v1820 = vrot.slane %v1684, %v1819
        %v1821 = vsel %vm881, %v1820, %v1816
        %v1822 = vlaneseq
        %v1823 = vshrl.u32 %v1822, 7
        %v1824 = vsub.s32 %v864, %v1823
        %v1825 = vrot.slane %v1687, %v1824
        %v1826 = vlaneseq
        %v1827 = vshrl.u32 %v1826, 7
        %v1828 = vsub.s32 %v869, %v1827
        %v1829 = vrot.slane %v1690, %v1828
        %v1830 = vsel %vm874, %v1829, %v1825
        %v1831 = vlaneseq
        %v1832 = vshrl.u32 %v1831, 7
        %v1833 = vsub.s32 %v876, %v1832
        %v1834 = vrot.slane %v1693, %v1833
        %v1835 = vsel %vm881, %v1834, %v1830
        %v1836 = vsel %vm981, %v1751, %v1737
        %v1837 = vsel %vm983, %v1765, %v1836
        %v1838 = vsel %vm985, %v1779, %v1837
        %v1839 = vsel %vm987, %v1793, %v1838
        %v1840 = vsel %vm989, %v1807, %v1839
        %v1841 = vsel %vm991, %v1821, %v1840
        %v1842 = vsel %vm993, %v1835, %v1841
        %v1845 = vsel %vm766, %v1695, 0
        %v1848 = vsel %vm766, %v1697, 0
        %v1851 = vsel %vm766, %v1699, 0
        %1853 = vmatprep.subr.bf16.mxu0 0
        %1854 = vmatpush1.bf16.xpose.msra.mxu0 0
        %1855 = vmatprep.subr.bf16.mxu0 0
        %1856 = vmatpush1.bf16.xpose.msra.mxu0 0
        %1857 = vmatprep.subr.bf16.mxu0 0
        %1858 = vmatpush1.bf16.xpose.msra.mxu0 0
        %1859 = vmatprep.subr.bf16.mxu0 0
        %1860 = vmatpush1.bf16.xpose.msra.mxu0 0
        %1861 = vmatprep.subr.bf16.mxu0 0
        %1862 = vmatpush1.bf16.xpose.msra.mxu0 0
        %1863 = vmatprep.subr.bf16.mxu0 0
        %1864 = vmatpush1.bf16.xpose.msra.mxu0 0
        %1865 = vmatprep.subr.bf16.mxu0 0
        %1866 = vmatpush1.bf16.xpose.msra.mxu0 %v1851
        %1867 = vmatprep.subr.bf16.mxu0 0
        %1868 = vmatpush1.bf16.xpose.msra.mxu0 %v1848
        %1869 = vmatprep.subr.bf16.mxu0 0
        %1870 = vmatpush2.bf16.xpose.msra.mxu0 0
        %1871 = vmatprep.subr.bf16.mxu0 0
        %1872 = vmatpush2.bf16.xpose.msra.mxu0 0
        %1873 = vmatprep.subr.bf16.mxu0 0
        %1874 = vmatpush2.bf16.xpose.msra.mxu0 0
        %1875 = vmatprep.subr.bf16.mxu0 0
        %1876 = vmatpush2.bf16.xpose.msra.mxu0 0
        %1877 = vmatprep.subr.bf16.mxu0 0
        %1878 = vmatpush2.bf16.xpose.msra.mxu0 0
        %1879 = vmatprep.subr.bf16.mxu0 0
        %1880 = vmatpush2.bf16.xpose.msra.mxu0 0
        %1881 = vmatprep.subr.bf16.mxu0 0
        %1882 = vmatpush2.bf16.xpose.msra.mxu0 0
        %1883 = vmatprep.subr.bf16.mxu0 0
        %1884 = vmatpush2.bf16.xpose.msra.mxu0 0
        %1885 = vmatprep.mubr.bf16.mxu0 0
        %1886 = vmatmul.mubr.bf16.gmra.mxu0 %v1845
        %v1887 = vpop.f32.mrf.mxu0
        %v1888 = vadd.f32 %v1842, %v1887
        %v1889 = vpop.f32.mrf.mxu0
        %v1890 = vpop.f32.mrf.mxu0
        %v1891 = vpop.f32.mrf.mxu0
        %1892 = vdwg.mxu0
        %v1893 = vsel %vm1045, %v1888, -inf
        %1894 = vmax.xlane.f32.xlu0 %v1893
        %v1895 = vpop.xlane.xlu0 %1894
        %v1896 = vsub.f32 %v1888, %v1895
        %v1897 = vmul.f32 %v1896, 1.442695
        %v1898 = vpow.pop %v1897
        %v1899 = vsel %vm1045, %v1898, 0.0
        %1900 = vadd.xlane.f32.xlu0 %v1899
        %v1901 = vpop.xlane.xlu0 %1900
        %v1902 = vrcp.pop %v1901
        %v1903 = vmul.f32 %v1898, %v1902
        %v1904 = vpack.c.bf16 %v1903, %v1903
        %1905 = vrot.lane.b32.xlu0 %v409, 96
        %v1906 = vpop.permute.xlu0 %1905
        %1907 = vrot.lane.b32.xlu0 %v410, 96
        %v1908 = vpop.permute.xlu0 %1907
        %v1911 = vsel %vm1045, %v1904, 0
        %v1914 = vsel %vm1061, %v1908, 0
        %1916 = vmatprep.subr.bf16.mxu0 0
        %1917 = vmatpush1.bf16.msra.mxu0 0
        %1918 = vmatprep.subr.bf16.mxu0 0
        %1919 = vmatpush1.bf16.msra.mxu0 0
        %1920 = vmatprep.subr.bf16.mxu0 0
        %1921 = vmatpush1.bf16.msra.mxu0 0
        %1922 = vmatprep.subr.bf16.mxu0 0
        %1923 = vmatpush1.bf16.msra.mxu0 0
        %1924 = vmatprep.subr.bf16.mxu0 0
        %1925 = vmatpush1.bf16.msra.mxu0 0
        %1926 = vmatprep.subr.bf16.mxu0 0
        %1927 = vmatpush1.bf16.msra.mxu0 0
        %1928 = vmatprep.subr.bf16.mxu0 0
        %1929 = vmatpush1.bf16.msra.mxu0 %v1914
        %1930 = vmatprep.subr.bf16.mxu0 0
        %1931 = vmatpush1.bf16.msra.mxu0 %v1906
        %1932 = vmatprep.subr.bf16.mxu0 0
        %1933 = vmatpush2.bf16.msra.mxu0 0
        %1934 = vmatprep.subr.bf16.mxu0 0
        %1935 = vmatpush2.bf16.msra.mxu0 0
        %1936 = vmatprep.subr.bf16.mxu0 0
        %1937 = vmatpush2.bf16.msra.mxu0 0
        %1938 = vmatprep.subr.bf16.mxu0 0
        %1939 = vmatpush2.bf16.msra.mxu0 0
        %1940 = vmatprep.subr.bf16.mxu0 0
        %1941 = vmatpush2.bf16.msra.mxu0 0
        %1942 = vmatprep.subr.bf16.mxu0 0
        %1943 = vmatpush2.bf16.msra.mxu0 0
        %1944 = vmatprep.subr.bf16.mxu0 0
        %1945 = vmatpush2.bf16.msra.mxu0 0
        %1946 = vmatprep.subr.bf16.mxu0 0
        %1947 = vmatpush2.bf16.msra.mxu0 0
        %1948 = vmatprep.mubr.bf16.mxu0 0
        %1949 = vmatmul.mubr.bf16.gmra.mxu0 %v1911
        %v1950 = vpop.f32.mrf.mxu0
        %v1951 = vadd.f32 0.0, %v1950
        %v1952 = vpop.f32.mrf.mxu0
        %v1953 = vpop.f32.mrf.mxu0
        %v1954 = vpop.f32.mrf.mxu0
        %1955 = vdwg.mxu0
        %1957 = vrot.lane.b32.xlu0 %v1951, 32
        %v1958 = vpop.permute.xlu0 %1957
        %vm1960 = vcmask 392448
        %1961 = vst.msk [vmem:[%s397] sm:$0xff] %vm1960, %v1958
        %s1962 = scalar_lea.vmem %s360, 16 [#allocation2]
        %1963 = vst.msk [vmem:[%s1962] sm:$0xff] %vm1045, %v1903
        %1964 = vrot.lane.b32.xlu0 %v742, 80
        %v1965 = vpop.permute.xlu0 %1964
        %1966 = vrot.lane.b32.xlu0 %v743, 80
        %v1967 = vpop.permute.xlu0 %1966
        %1968 = vrot.lane.b32.xlu0 %v744, 80
        %v1969 = vpop.permute.xlu0 %1968
        %1970 = vrot.lane.b32.xlu0 %v745, 80
        %v1971 = vpop.permute.xlu0 %1970
        %1972 = vrot.lane.b32.xlu0 %v746, 80
        %v1973 = vpop.permute.xlu0 %1972
        %1974 = vrot.lane.b32.xlu0 %v747, 80
        %v1975 = vpop.permute.xlu0 %1974
        %1976 = vrot.lane.b32.xlu0 %v748, 80
        %v1977 = vpop.permute.xlu0 %1976
        %1978 = vrot.lane.b32.xlu0 %v749, 80
        %v1979 = vpop.permute.xlu0 %1978
        %1980 = vrot.lane.b32.xlu0 %v750, 80
        %v1981 = vpop.permute.xlu0 %1980
        %1982 = vrot.lane.b32.xlu0 %v751, 80
        %v1983 = vpop.permute.xlu0 %1982
        %1984 = vrot.lane.b32.xlu0 %v752, 80
        %v1985 = vpop.permute.xlu0 %1984
        %1986 = vrot.lane.b32.xlu0 %v753, 80
        %v1987 = vpop.permute.xlu0 %1986
        %1988 = vrot.lane.b32.xlu0 %v754, 80
        %v1989 = vpop.permute.xlu0 %1988
        %1990 = vrot.lane.b32.xlu0 %v755, 80
        %v1991 = vpop.permute.xlu0 %1990
        %1992 = vrot.lane.b32.xlu0 %v756, 80
        %v1993 = vpop.permute.xlu0 %1992
        %1994 = vrot.lane.b32.xlu0 %v757, 80
        %v1995 = vpop.permute.xlu0 %1994
        %1996 = vrot.lane.b32.xlu0 %v758, 80
        %v1997 = vpop.permute.xlu0 %1996
        %1998 = vrot.lane.b32.xlu0 %v759, 80
        %v1999 = vpop.permute.xlu0 %1998
        %2000 = vrot.lane.b32.xlu0 %v760, 80
        %v2001 = vpop.permute.xlu0 %2000
        %2002 = vrot.lane.b32.xlu0 %v761, 80
        %v2003 = vpop.permute.xlu0 %2002
        %2004 = vrot.lane.b32.xlu0 %v762, 80
        %v2005 = vpop.permute.xlu0 %2004
        %2006 = vrot.lane.b32.xlu0 %v763, 80
        %v2007 = vpop.permute.xlu0 %2006
        %2008 = vrot.lane.b32.xlu0 %v764, 80
        %v2009 = vpop.permute.xlu0 %2008
        %2010 = vrot.lane.b32.xlu0 %v765, 80
        %v2011 = vpop.permute.xlu0 %2010
        %v2036 = vsel %vm766, %v1965, 0.0
        %2037 = vadd.xlane.f32.xlu0 %v2036
        %v2038 = vpop.xlane.xlu0 %2037
        %v2039 = vsel %vm766, %v1967, 0.0
        %2040 = vadd.xlane.f32.xlu0 %v2039
        %v2041 = vpop.xlane.xlu0 %2040
        %v2042 = vsel %vm766, %v1969, 0.0
        %2043 = vadd.xlane.f32.xlu0 %v2042
        %v2044 = vpop.xlane.xlu0 %2043
        %v2045 = vsel %vm766, %v1971, 0.0
        %2046 = vadd.xlane.f32.xlu0 %v2045
        %v2047 = vpop.xlane.xlu0 %2046
        %v2048 = vsel %vm766, %v1973, 0.0
        %2049 = vadd.xlane.f32.xlu0 %v2048
        %v2050 = vpop.xlane.xlu0 %2049
        %v2051 = vsel %vm766, %v1975, 0.0
        %2052 = vadd.xlane.f32.xlu0 %v2051
        %v2053 = vpop.xlane.xlu0 %2052
        %v2054 = vsel %vm766, %v1977, 0.0
        %2055 = vadd.xlane.f32.xlu0 %v2054
        %v2056 = vpop.xlane.xlu0 %2055
        %v2057 = vsel %vm766, %v1979, 0.0
        %2058 = vadd.xlane.f32.xlu0 %v2057
        %v2059 = vpop.xlane.xlu0 %2058
        %v2060 = vsel %vm766, %v1981, 0.0
        %2061 = vadd.xlane.f32.xlu0 %v2060
        %v2062 = vpop.xlane.xlu0 %2061
        %v2063 = vsel %vm766, %v1983, 0.0
        %2064 = vadd.xlane.f32.xlu0 %v2063
        %v2065 = vpop.xlane.xlu0 %2064
        %v2066 = vsel %vm766, %v1985, 0.0
        %2067 = vadd.xlane.f32.xlu0 %v2066
        %v2068 = vpop.xlane.xlu0 %2067
        %v2069 = vsel %vm766, %v1987, 0.0
        %2070 = vadd.xlane.f32.xlu0 %v2069
        %v2071 = vpop.xlane.xlu0 %2070
        %v2072 = vsel %vm766, %v1989, 0.0
        %2073 = vadd.xlane.f32.xlu0 %v2072
        %v2074 = vpop.xlane.xlu0 %2073
        %v2075 = vsel %vm766, %v1991, 0.0
        %2076 = vadd.xlane.f32.xlu0 %v2075
        %v2077 = vpop.xlane.xlu0 %2076
        %v2078 = vsel %vm766, %v1993, 0.0
        %2079 = vadd.xlane.f32.xlu0 %v2078
        %v2080 = vpop.xlane.xlu0 %2079
        %v2081 = vsel %vm766, %v1995, 0.0
        %2082 = vadd.xlane.f32.xlu0 %v2081
        %v2083 = vpop.xlane.xlu0 %2082
        %v2084 = vsel %vm766, %v1997, 0.0
        %2085 = vadd.xlane.f32.xlu0 %v2084
        %v2086 = vpop.xlane.xlu0 %2085
        %v2087 = vsel %vm766, %v1999, 0.0
        %2088 = vadd.xlane.f32.xlu0 %v2087
        %v2089 = vpop.xlane.xlu0 %2088
        %v2090 = vsel %vm766, %v2001, 0.0
        %2091 = vadd.xlane.f32.xlu0 %v2090
        %v2092 = vpop.xlane.xlu0 %2091
        %v2093 = vsel %vm766, %v2003, 0.0
        %2094 = vadd.xlane.f32.xlu0 %v2093
        %v2095 = vpop.xlane.xlu0 %2094
        %v2096 = vsel %vm766, %v2005, 0.0
        %2097 = vadd.xlane.f32.xlu0 %v2096
        %v2098 = vpop.xlane.xlu0 %2097
        %v2099 = vsel %vm766, %v2007, 0.0
        %2100 = vadd.xlane.f32.xlu0 %v2099
        %v2101 = vpop.xlane.xlu0 %2100
        %v2102 = vsel %vm766, %v2009, 0.0
        %2103 = vadd.xlane.f32.xlu0 %v2102
        %v2104 = vpop.xlane.xlu0 %2103
        %v2105 = vsel %vm766, %v2011, 0.0
        %2106 = vadd.xlane.f32.xlu0 %v2105
        %v2107 = vpop.xlane.xlu0 %2106
        %2108 = vrot.lane.b32.xlu0 %v400, 80
        %v2109 = vpop.permute.xlu0 %2108
        %2110 = vrot.lane.b32.xlu0 %v404, 80
        %v2111 = vpop.permute.xlu0 %2110
        %2112 = vrot.lane.b32.xlu0 %v405, 80
        %v2113 = vpop.permute.xlu0 %2112
        %v2138 = vlaneseq
        %v2139 = vshrl.u32 %v2138, 7
        %v2140 = vsub.s32 %v864, %v2139
        %v2141 = vrot.slane %v2038, %v2140
        %v2142 = vlaneseq
        %v2143 = vshrl.u32 %v2142, 7
        %v2144 = vsub.s32 %v869, %v2143
        %v2145 = vrot.slane %v2041, %v2144
        %v2146 = vsel %vm874, %v2145, %v2141
        %v2147 = vlaneseq
        %v2148 = vshrl.u32 %v2147, 7
        %v2149 = vsub.s32 %v876, %v2148
        %v2150 = vrot.slane %v2044, %v2149
        %v2151 = vsel %vm881, %v2150, %v2146
        %v2152 = vlaneseq
        %v2153 = vshrl.u32 %v2152, 7
        %v2154 = vsub.s32 %v864, %v2153
        %v2155 = vrot.slane %v2047, %v2154
        %v2156 = vlaneseq
        %v2157 = vshrl.u32 %v2156, 7
        %v2158 = vsub.s32 %v869, %v2157
        %v2159 = vrot.slane %v2050, %v2158
        %v2160 = vsel %vm874, %v2159, %v2155
        %v2161 = vlaneseq
        %v2162 = vshrl.u32 %v2161, 7
        %v2163 = vsub.s32 %v876, %v2162
        %v2164 = vrot.slane %v2053, %v2163
        %v2165 = vsel %vm881, %v2164, %v2160
        %v2166 = vlaneseq
        %v2167 = vshrl.u32 %v2166, 7
        %v2168 = vsub.s32 %v864, %v2167
        %v2169 = vrot.slane %v2056, %v2168
        %v2170 = vlaneseq
        %v2171 = vshrl.u32 %v2170, 7
        %v2172 = vsub.s32 %v869, %v2171
        %v2173 = vrot.slane %v2059, %v2172
        %v2174 = vsel %vm874, %v2173, %v2169
        %v2175 = vlaneseq
        %v2176 = vshrl.u32 %v2175, 7
        %v2177 = vsub.s32 %v876, %v2176
        %v2178 = vrot.slane %v2062, %v2177
        %v2179 = vsel %vm881, %v2178, %v2174
        %v2180 = vlaneseq
        %v2181 = vshrl.u32 %v2180, 7
        %v2182 = vsub.s32 %v864, %v2181
        %v2183 = vrot.slane %v2065, %v2182
        %v2184 = vlaneseq
        %v2185 = vshrl.u32 %v2184, 7
        %v2186 = vsub.s32 %v869, %v2185
        %v2187 = vrot.slane %v2068, %v2186
        %v2188 = vsel %vm874, %v2187, %v2183
        %v2189 = vlaneseq
        %v2190 = vshrl.u32 %v2189, 7
        %v2191 = vsub.s32 %v876, %v2190
        %v2192 = vrot.slane %v2071, %v2191
        %v2193 = vsel %vm881, %v2192, %v2188
        %v2194 = vlaneseq
        %v2195 = vshrl.u32 %v2194, 7
        %v2196 = vsub.s32 %v864, %v2195
        %v2197 = vrot.slane %v2074, %v2196
        %v2198 = vlaneseq
        %v2199 = vshrl.u32 %v2198, 7
        %v2200 = vsub.s32 %v869, %v2199
        %v2201 = vrot.slane %v2077, %v2200
        %v2202 = vsel %vm874, %v2201, %v2197
        %v2203 = vlaneseq
        %v2204 = vshrl.u32 %v2203, 7
        %v2205 = vsub.s32 %v876, %v2204
        %v2206 = vrot.slane %v2080, %v2205
        %v2207 = vsel %vm881, %v2206, %v2202
        %v2208 = vlaneseq
        %v2209 = vshrl.u32 %v2208, 7
        %v2210 = vsub.s32 %v864, %v2209
        %v2211 = vrot.slane %v2083, %v2210
        %v2212 = vlaneseq
        %v2213 = vshrl.u32 %v2212, 7
        %v2214 = vsub.s32 %v869, %v2213
        %v2215 = vrot.slane %v2086, %v2214
        %v2216 = vsel %vm874, %v2215, %v2211
        %v2217 = vlaneseq
        %v2218 = vshrl.u32 %v2217, 7
        %v2219 = vsub.s32 %v876, %v2218
        %v2220 = vrot.slane %v2089, %v2219
        %v2221 = vsel %vm881, %v2220, %v2216
        %v2222 = vlaneseq
        %v2223 = vshrl.u32 %v2222, 7
        %v2224 = vsub.s32 %v864, %v2223
        %v2225 = vrot.slane %v2092, %v2224
        %v2226 = vlaneseq
        %v2227 = vshrl.u32 %v2226, 7
        %v2228 = vsub.s32 %v869, %v2227
        %v2229 = vrot.slane %v2095, %v2228
        %v2230 = vsel %vm874, %v2229, %v2225
        %v2231 = vlaneseq
        %v2232 = vshrl.u32 %v2231, 7
        %v2233 = vsub.s32 %v876, %v2232
        %v2234 = vrot.slane %v2098, %v2233
        %v2235 = vsel %vm881, %v2234, %v2230
        %v2236 = vlaneseq
        %v2237 = vshrl.u32 %v2236, 7
        %v2238 = vsub.s32 %v864, %v2237
        %v2239 = vrot.slane %v2101, %v2238
        %v2240 = vlaneseq
        %v2241 = vshrl.u32 %v2240, 7
        %v2242 = vsub.s32 %v869, %v2241
        %v2243 = vrot.slane %v2104, %v2242
        %v2244 = vsel %vm874, %v2243, %v2239
        %v2245 = vlaneseq
        %v2246 = vshrl.u32 %v2245, 7
        %v2247 = vsub.s32 %v876, %v2246
        %v2248 = vrot.slane %v2107, %v2247
        %v2249 = vsel %vm881, %v2248, %v2244
        %v2250 = vsel %vm981, %v2165, %v2151
        %v2251 = vsel %vm983, %v2179, %v2250
        %v2252 = vsel %vm985, %v2193, %v2251
        %v2253 = vsel %vm987, %v2207, %v2252
        %v2254 = vsel %vm989, %v2221, %v2253
        %v2255 = vsel %vm991, %v2235, %v2254
        %v2256 = vsel %vm993, %v2249, %v2255
        %v2259 = vsel %vm766, %v2109, 0
        %v2262 = vsel %vm766, %v2111, 0
        %v2265 = vsel %vm766, %v2113, 0
        %2267 = vmatprep.subr.bf16.mxu0 0
        %2268 = vmatpush1.bf16.xpose.msra.mxu0 0
        %2269 = vmatprep.subr.bf16.mxu0 0
        %2270 = vmatpush1.bf16.xpose.msra.mxu0 0
        %2271 = vmatprep.subr.bf16.mxu0 0
        %2272 = vmatpush1.bf16.xpose.msra.mxu0 0
        %2273 = vmatprep.subr.bf16.mxu0 0
        %2274 = vmatpush1.bf16.xpose.msra.mxu0 0
        %2275 = vmatprep.subr.bf16.mxu0 0
        %2276 = vmatpush1.bf16.xpose.msra.mxu0 0
        %2277 = vmatprep.subr.bf16.mxu0 0
        %2278 = vmatpush1.bf16.xpose.msra.mxu0 0
        %2279 = vmatprep.subr.bf16.mxu0 0
        %2280 = vmatpush1.bf16.xpose.msra.mxu0 %v2265
        %2281 = vmatprep.subr.bf16.mxu0 0
        %2282 = vmatpush1.bf16.xpose.msra.mxu0 %v2262
        %2283 = vmatprep.subr.bf16.mxu0 0
        %2284 = vmatpush2.bf16.xpose.msra.mxu0 0
        %2285 = vmatprep.subr.bf16.mxu0 0
        %2286 = vmatpush2.bf16.xpose.msra.mxu0 0
        %2287 = vmatprep.subr.bf16.mxu0 0
        %2288 = vmatpush2.bf16.xpose.msra.mxu0 0
        %2289 = vmatprep.subr.bf16.mxu0 0
        %2290 = vmatpush2.bf16.xpose.msra.mxu0 0
        %2291 = vmatprep.subr.bf16.mxu0 0
        %2292 = vmatpush2.bf16.xpose.msra.mxu0 0
        %2293 = vmatprep.subr.bf16.mxu0 0
        %2294 = vmatpush2.bf16.xpose.msra.mxu0 0
        %2295 = vmatprep.subr.bf16.mxu0 0
        %2296 = vmatpush2.bf16.xpose.msra.mxu0 0
        %2297 = vmatprep.subr.bf16.mxu0 0
        %2298 = vmatpush2.bf16.xpose.msra.mxu0 0
        %2299 = vmatprep.mubr.bf16.mxu0 0
        %2300 = vmatmul.mubr.bf16.gmra.mxu0 %v2259
        %v2301 = vpop.f32.mrf.mxu0
        %v2302 = vadd.f32 %v2256, %v2301
        %v2303 = vpop.f32.mrf.mxu0
        %v2304 = vpop.f32.mrf.mxu0
        %v2305 = vpop.f32.mrf.mxu0
        %2306 = vdwg.mxu0
        %v2307 = vsel %vm1045, %v2302, -inf
        %2308 = vmax.xlane.f32.xlu0 %v2307
        %v2309 = vpop.xlane.xlu0 %2308
        %v2310 = vsub.f32 %v2302, %v2309
        %v2311 = vmul.f32 %v2310, 1.442695
        %v2312 = vpow.pop %v2311
        %v2313 = vsel %vm1045, %v2312, 0.0
        %2314 = vadd.xlane.f32.xlu0 %v2313
        %v2315 = vpop.xlane.xlu0 %2314
        %v2316 = vrcp.pop %v2315
        %v2317 = vmul.f32 %v2312, %v2316
        %v2318 = vpack.c.bf16 %v2317, %v2317
        %2319 = vrot.lane.b32.xlu0 %v409, 80
        %v2320 = vpop.permute.xlu0 %2319
        %2321 = vrot.lane.b32.xlu0 %v410, 80
        %v2322 = vpop.permute.xlu0 %2321
        %v2325 = vsel %vm1045, %v2318, 0
        %v2328 = vsel %vm1061, %v2322, 0
        %2330 = vmatprep.subr.bf16.mxu0 0
        %2331 = vmatpush1.bf16.msra.mxu0 0
        %2332 = vmatprep.subr.bf16.mxu0 0
        %2333 = vmatpush1.bf16.msra.mxu0 0
        %2334 = vmatprep.subr.bf16.mxu0 0
        %2335 = vmatpush1.bf16.msra.mxu0 0
        %2336 = vmatprep.subr.bf16.mxu0 0
        %2337 = vmatpush1.bf16.msra.mxu0 0
        %2338 = vmatprep.subr.bf16.mxu0 0
        %2339 = vmatpush1.bf16.msra.mxu0 0
        %2340 = vmatprep.subr.bf16.mxu0 0
        %2341 = vmatpush1.bf16.msra.mxu0 0
        %2342 = vmatprep.subr.bf16.mxu0 0
        %2343 = vmatpush1.bf16.msra.mxu0 %v2328
        %2344 = vmatprep.subr.bf16.mxu0 0
        %2345 = vmatpush1.bf16.msra.mxu0 %v2320
        %2346 = vmatprep.subr.bf16.mxu0 0
        %2347 = vmatpush2.bf16.msra.mxu0 0
        %2348 = vmatprep.subr.bf16.mxu0 0
        %2349 = vmatpush2.bf16.msra.mxu0 0
        %2350 = vmatprep.subr.bf16.mxu0 0
        %2351 = vmatpush2.bf16.msra.mxu0 0
        %2352 = vmatprep.subr.bf16.mxu0 0
        %2353 = vmatpush2.bf16.msra.mxu0 0
        %2354 = vmatprep.subr.bf16.mxu0 0
        %2355 = vmatpush2.bf16.msra.mxu0 0
        %2356 = vmatprep.subr.bf16.mxu0 0
        %2357 = vmatpush2.bf16.msra.mxu0 0
        %2358 = vmatprep.subr.bf16.mxu0 0
        %2359 = vmatpush2.bf16.msra.mxu0 0
        %2360 = vmatprep.subr.bf16.mxu0 0
        %2361 = vmatpush2.bf16.msra.mxu0 0
        %2362 = vmatprep.mubr.bf16.mxu0 0
        %2363 = vmatmul.mubr.bf16.gmra.mxu0 %v2325
        %v2364 = vpop.f32.mrf.mxu0
        %v2365 = vadd.f32 0.0, %v2364
        %v2366 = vpop.f32.mrf.mxu0
        %v2367 = vpop.f32.mrf.mxu0
        %v2368 = vpop.f32.mrf.mxu0
        %2369 = vdwg.mxu0
        %2371 = vrot.lane.b32.xlu0 %v2365, 48
        %v2372 = vpop.permute.xlu0 %2371
        %vm2374 = vcmask 523648
        %2375 = vst.msk [vmem:[%s397] sm:$0xff] %vm2374, %v2372
        %s2376 = scalar_lea.vmem %s360, 24 [#allocation2]
        %2377 = vst.msk [vmem:[%s2376] sm:$0xff] %vm1045, %v2317
        %p2378 = scmp.lt.s32.totalorder %s23, 1
        %s2379 = scalar_select %p2378, %s23, 1
        %p2380 = scmp.lt.s32.totalorder %s24, 2
        %s2381 = scalar_select %p2380, %s24, 2
        %s2382 = smul.addr %s2379, 3
        %s2383 = sadd.s32 %s2381, %s2382
        %s2384 = smul.addr %s2383, 8
        %s2385 = scalar_lea.vmem %s6, %s2384
        %s2386 = sand.u32 %s219, 1
        %s2387 = sand.u32 %s219, 1
        %s2388 = smul.addr %s2387, 32
        %s2389 = scalar_lea.vmem [#allocation2], %s2388
        // Predicated region
        $region45: #{rpe_multihead_attention.7} parent=43 // pred_check
          %p2390 = pneg %p201
        $region46: #{rpe_multihead_attention.7} parent=43 // pred_check_branch
          %2392 = sbr.rel (%p2390) target = $region48
        $region47: #{rpe_multihead_attention.7} parent=43 // pred_region
          _
        $region48: #{rpe_multihead_attention.7} parent=43 // pred_fallthru
          _
        // Predicated region
        $region49: #{rpe_multihead_attention.7} parent=43 // pred_check
          %p2393 = pneg %p229
        $region50: #{rpe_multihead_attention.7} parent=43 // pred_check_branch
          %2395 = sbr.rel (%p2393) target = $region52
        $region51: #{rpe_multihead_attention.7} parent=43 // pred_region
          %s2396 = smul.addr %s23, 12
          %s2397 = sadd.s32 %s24, %s2396
          %s2398 = smul.addr %s2397, 8
          %s2399 = scalar_lea.vmem %s7, %s2398
          // Predicated region
          $region53: #{rpe_multihead_attention.7} parent=51 // pred_check
            _
          $region54: #{rpe_multihead_attention.7} parent=51 // pred_check_branch
            %2401 = sbr.rel (0) target = $region56
          $region55: #{rpe_multihead_attention.7} parent=51 // pred_region
            // Predicated region
            $region57: #{rpe_multihead_attention.7} parent=55 // pred_check
              _
            $region58: #{rpe_multihead_attention.7} parent=55 // pred_check_branch
              %2403 = sbr.rel (0) target = $region60
            $region59: #{rpe_multihead_attention.7} parent=55 // pred_region
              // Predicated region
              $region72: #{rpe_multihead_attention.7} parent=59 // pred_check
                _
              $region73: #{rpe_multihead_attention.7} parent=59 // pred_check_branch
                %2425 = sbr.rel (0) target = $region75
              $region74: #{rpe_multihead_attention.7} parent=59 // pred_region
                loop: start=0, step=1, limit=1
                $region76: #{rpe_multihead_attention.7} parent=74 // loop_pre_header
                  _
                $region77: #{rpe_multihead_attention.7} parent=74 // loop_header
                  %s2427 = sphi 0, %s2431
                  %p2428 = scmp.ge.s32.totalorder %s2427, 1
                  %s2432 = sphi %s2389, %s2389
                  %s2433 = sphi %s2399, %s2399
                $region78: #{rpe_multihead_attention.7} parent=74 // loop_header_branch
                  %2430 = sbr.rel (%p2428) target = $region82
                $region79: #{rpe_multihead_attention.7} parent=74 // loop_body
                  %v2434 = vld [vmem:[%s2432] sm:$0xff]
                  %2435 = vst [vmem:[%s2433] sm:$0xff] %v2434
                  %v2436 = vld [vmem:[%s2432 + $0x8] sm:$0xff]
                  %2437 = vst [vmem:[%s2433 + $0x18] sm:$0xff] %v2436
                  %v2438 = vld [vmem:[%s2432 + $0x10] sm:$0xff]
                  %2439 = vst [vmem:[%s2433 + $0x30] sm:$0xff] %v2438
                  %v2440 = vld [vmem:[%s2432 + $0x18] sm:$0xff]
                  %2441 = vst [vmem:[%s2433 + $0x48] sm:$0xff] %v2440
                $region80: #{rpe_multihead_attention.7} parent=74 // loop_footer
                  %s2431 = sadd.s32 1, %s2427
                $region81: #{rpe_multihead_attention.7} parent=74 // loop_footer_branch
                  %2426 = sbr.rel target = $region77
                $region82: #{rpe_multihead_attention.7} parent=74 // loop_exit
                  _
              $region75: #{rpe_multihead_attention.7} parent=59 // pred_fallthru
                _
              // Predicated region
              $region83: #{rpe_multihead_attention.7} parent=59 // pred_check
                _
              $region84: #{rpe_multihead_attention.7} parent=59 // pred_check_branch
                %2443 = sbr.rel target = $region86
              $region85: #{rpe_multihead_attention.7} parent=59 // pred_region
                _
              $region86: #{rpe_multihead_attention.7} parent=59 // pred_fallthru
                _
            $region60: #{rpe_multihead_attention.7} parent=55 // pred_fallthru
              _
            // Predicated region
            $region61: #{rpe_multihead_attention.7} parent=55 // pred_check
              _
            $region62: #{rpe_multihead_attention.7} parent=55 // pred_check_branch
              %2405 = sbr.rel target = $region64
            $region63: #{rpe_multihead_attention.7} parent=55 // pred_region
              %s2407 = ssub.s32 256, 1
              loop: start=0, step=1, limit=1
              $region65: #{rpe_multihead_attention.7} parent=63 // loop_pre_header
                _
              $region66: #{rpe_multihead_attention.7} parent=63 // loop_header
                %s2409 = sphi 0, %s2413
                %p2410 = scmp.ge.s32.totalorder %s2409, 1
                %s2414 = sphi %s2389, %s2389
                %s2415 = sphi %s2399, %s2399
              $region67: #{rpe_multihead_attention.7} parent=63 // loop_header_branch
                %2412 = sbr.rel (%p2410) target = $region71
              $region68: #{rpe_multihead_attention.7} parent=63 // loop_body
                %v2416 = vld [vmem:[%s2414] sm:%s2407]
                %2417 = vst [vmem:[%s2415] sm:%s2407] %v2416
                %v2418 = vld [vmem:[%s2414 + $0x8] sm:%s2407]
                %2419 = vst [vmem:[%s2415 + $0x18] sm:%s2407] %v2418
                %v2420 = vld [vmem:[%s2414 + $0x10] sm:%s2407]
                %2421 = vst [vmem:[%s2415 + $0x30] sm:%s2407] %v2420
                %v2422 = vld [vmem:[%s2414 + $0x18] sm:%s2407]
                %2423 = vst [vmem:[%s2415 + $0x48] sm:%s2407] %v2422
              $region69: #{rpe_multihead_attention.7} parent=63 // loop_footer
                %s2413 = sadd.s32 1, %s2409
              $region70: #{rpe_multihead_attention.7} parent=63 // loop_footer_branch
                %2408 = sbr.rel target = $region66
              $region71: #{rpe_multihead_attention.7} parent=63 // loop_exit
                _
            $region64: #{rpe_multihead_attention.7} parent=55 // pred_fallthru
              _
          $region56: #{rpe_multihead_attention.7} parent=51 // pred_fallthru
            _
          %2444 = vnop
        $region52: #{rpe_multihead_attention.7} parent=43 // pred_fallthru
          _
      $region44: #{rpe_multihead_attention.7} parent=5 // pred_fallthru
        _
      %p2445 = scmp.le.s32.totalorder 2, %s14
      // Predicated region
      $region87: #{rpe_multihead_attention.7} parent=5 // pred_check
        %p2446 = pneg %p2445
      $region88: #{rpe_multihead_attention.7} parent=5 // pred_check_branch
        %2448 = sbr.rel (%p2446) target = $region90
      $region89: #{rpe_multihead_attention.7} parent=5 // pred_region
        %s2449 = ssub.s32 %s14, 2
        // Predicated region
        $region91: #{rpe_multihead_attention.7} parent=89 // pred_check
          %p2450 = pneg %p207
        $region92: #{rpe_multihead_attention.7} parent=89 // pred_check_branch
          %2452 = sbr.rel (%p2450) target = $region94
        $region93: #{rpe_multihead_attention.7} parent=89 // pred_region
          %p2453 = scmp.lt.s32.totalorder %s25, 1
          %s2454 = scalar_select %p2453, %s25, 1
          %p2455 = scmp.lt.s32.totalorder %s26, 2
          %s2456 = scalar_select %p2455, %s26, 2
          %s2457 = smul.addr %s2454, 3
          %s2458 = sadd.s32 %s2456, %s2457
          %s2459 = smul.addr %s2458, 8
          %s2460 = scalar_lea.vmem %s6, %s2459
        $region94: #{rpe_multihead_attention.7} parent=89 // pred_fallthru
          _
        // Predicated region
        $region95: #{rpe_multihead_attention.7} parent=89 // pred_check
          %p2461 = pneg %p235
        $region96: #{rpe_multihead_attention.7} parent=89 // pred_check_branch
          %2463 = sbr.rel (%p2461) target = $region98
        $region97: #{rpe_multihead_attention.7} parent=89 // pred_region
          %s2464 = sand.u32 %s220, 1
          %s2465 = sand.u32 %s220, 1
          %s2466 = smul.addr %s2465, 32
          %s2467 = scalar_lea.vmem [#allocation2], %s2466
        $region98: #{rpe_multihead_attention.7} parent=89 // pred_fallthru
          _
      $region90: #{rpe_multihead_attention.7} parent=5 // pred_fallthru
        _
    $region6: #{rpe_multihead_attention.7} parent=1 // loop_footer
      %s18 = sadd.s32 1, %s14
    $region7: #{rpe_multihead_attention.7} parent=1 // loop_footer_branch
      %13 = sbr.rel target = $region3
    $region8: #{rpe_multihead_attention.7} parent=1 // loop_exit
      _

</llo_original>
